<compile_context>
chip_gen: v7x
topology: tpu7x:2x2x1
jax: 0.10.0
libtpu: 0.0.40
codegen_flags: <defaults>
</compile_context>

<pallas_src>
import functools

import jax
import jax.numpy as jnp
from jax import lax
from jax.experimental import pallas as pl
from jax.experimental.pallas import tpu as pltpu


def _round_up(x, mult):
    return ((x + mult - 1) // mult) * mult


def _round_down(x, mult):
    return (x // mult) * mult


def _default_vmem_limit_bytes():
    """Generation-aware VMEM budget: ~96 MiB on v5e/v6e (128 MiB physical),
    ~48 MiB on v7x (64 MiB physical), leaving headroom for Mosaic scratch."""
    try:
        cap = int(pltpu.get_tpu_info().vmem_capacity_bytes)
    except Exception:
        cap = 64 * 1024 * 1024          # conservative: assume v7x-sized VMEM
    return min(cap * 3 // 4, 100 * 1024 * 1024)


def _margin_head_kernel(emb_ref, ker_ref, lbl_ref, out_ref, *, s, m, tn):
    """One (batch-tile, column-tile) block of the CosFace classification head.

    Grid = (n_tiles, b_tiles): column tiles outer so the streamed weight tile
    keeps the same block index (and is NOT re-fetched) across the inner batch
    loop.

    emb_ref: (tb, K)  matmul dtype -- rows already L2-normalized (hoisted)
    ker_ref: (K, tn)  matmul dtype -- raw (un-normalized) weight column tile
    lbl_ref: (tb, 1)  int32        -- -1 means "no margin for this row"
    out_ref: (tb, tn) float32
    """
    j = pl.program_id(0)                                 # column-tile index

    e_n = emb_ref[...]
    w = ker_ref[...]

    # MXU: raw logits against un-normalized weight columns, f32 accumulation.
    raw = jnp.dot(e_n, w, preferred_element_type=jnp.float32)          # (tb, tn)

    # Column L2-norm folded into an output scale.  The K-axis reduction of w^2
    # is offloaded to the MXU (ones-row matmul, f32 accumulation) instead of a
    # VALU/XLU sublane reduce over an upcast K x tn f32 temp: frees the vector
    # slots and the hidden VMEM scratch (matters on v7x's 64 MiB).
    ones = jnp.ones((8, e_n.shape[1]), dtype=w.dtype)    # 8 sublanes: MXU-safe LHS
    sq = jnp.dot(ones, w * w, preferred_element_type=jnp.float32)[0:1, :]  # (1, tn)
    scale = s * lax.rsqrt(jnp.maximum(sq, 1e-24))        # EUP rsqrt; eps matches F.normalize(1e-12)

    # CosFace margin: subtract m at (i, label[i]) for rows with label != -1,
    # folded into the already-s-scaled output write.  Labels are in [-1, N),
    # so out-of-range (>= N) lanes of the ragged tail tile can never be hit
    # (and are masked on the output write anyway).
    lbl = lbl_ref[...]                                   # (tb, 1)
    col = lax.broadcasted_iota(jnp.int32, raw.shape, 1) + j * tn
    hit = (col == lbl) & (lbl != -1)

    out_ref[...] = raw * scale - (m * s) * hit.astype(jnp.float32)


def margin_softmax_classifier(embedding, kernel, label, *, s=64.0, m=0.4,
                              tn=2048, batch_tile=256,
                              matmul_dtype=jnp.bfloat16,
                              vmem_limit_bytes=None):
    """CosFace head: scaled (cosine - margin-at-label) logits.

    embedding: (B, K) float; kernel: (K, N) float; label: (B,) int with values
    in [-1, N) where -1 means "no margin for this row".

    matmul_dtype: dtype the embedding / weight are streamed in.  Default bf16:
      the kernel is HBM-bound on the K x N weight stream, so halving the
      weight bytes is ~2x wall-clock (keep the parameter stored in bf16 across
      calls so the cast below is a no-op).  Pass jnp.float32 for full-precision
      streaming, or None to stream in the weight's existing dtype.
    """
    B, K = embedding.shape
    K2, N = kernel.shape
    assert K == K2, "embedding / kernel feature-dim mismatch"

    if vmem_limit_bytes is None:
        vmem_limit_bytes = _default_vmem_limit_bytes()

    # --- hoisted: row-normalize the embedding ONCE (not once per weight tile) ---
    emb_f32 = embedding.astype(jnp.float32)
    e_norm = jnp.sqrt(jnp.sum(emb_f32 * emb_f32, axis=1, keepdims=True))
    e_n = emb_f32 / jnp.maximum(e_norm, 1e-12)

    if matmul_dtype is not None:
        e_n = e_n.astype(matmul_dtype)
        kernel = kernel.astype(matmul_dtype)
    else:
        e_n = e_n.astype(kernel.dtype)
    itemsize = jnp.dtype(kernel.dtype).itemsize
    # TODO(synk): on v7x, fp8 weight streaming (reusing the per-column rsqrt as
    # the dequant scale) would halve HBM bytes again; needs accuracy validation.

    label2d = label.astype(jnp.int32).reshape(B, 1)

    # --- batch tile (MXU LHS rows / resident embedding+output rows) ---
    tb = B if B <= batch_tile else max(8, _round_down(batch_tile, 8))

    # --- column tile: as large as the VMEM budget allows, multiple of 256 ---
    usable = int(vmem_limit_bytes * 0.8)
    tn_req = max(128, int(tn))
    while True:
        # per grid step: dbl-buffered weight tile + w*w temp (per column of tn),
        # dbl-buffered output tile + raw f32 temp, resident embedding + labels.
        fixed = 2 * tb * K * itemsize + 2 * tb * 4 + 4096
        per_col = 3 * K * itemsize + 3 * tb * 4
        max_tn = (usable - fixed) // per_col
        if max_tn >= 128 or tb <= 8:
            break
        tb = max(8, tb // 2)            # shrink the batch tile until it fits
    if max_tn < 128:
        raise ValueError("VMEM budget too small for a 128-wide column tile; "
                         "reduce K / batch_tile or raise vmem_limit_bytes.")

    tn = min(tn_req, int(max_tn), _round_up(N, 256))
    tn = _round_down(tn, 256) if tn >= 256 else 128

    # No jnp.pad of the weight for ragged N: the tail tile's OOB lanes are
    # simply masked on the output write (and never receive the margin).
    n_tiles = pl.cdiv(N, tn)
    b_tiles = pl.cdiv(B, tb)
    grid = (n_tiles, b_tiles)           # column tiles outer -> weight resident over batch

    kern = functools.partial(_margin_head_kernel, s=float(s), m=float(m), tn=tn)

    cost = pl.CostEstimate(
        flops=2 * B * K * N + 2 * K * N,
        transcendentals=int(n_tiles) * int(b_tiles) * tn,
        bytes_accessed=(K * N * itemsize                     # weight stream (once)
                        + int(n_tiles) * B * K * itemsize    # embedding re-read per column tile
                        + B * N * 4 + B * 4),
    )

    def build_and_run(single_buffer_resident):
        resident_kwargs = {}
        if single_buffer_resident and b_tiles == 1:
            # Constant-index resident inputs: one buffer is enough; reclaims
            # the dead second copy of the (tb, K) embedding block.
            resident_kwargs = dict(pipeline_mode=pl.Buffered(1))
        in_specs = [
            pl.BlockSpec((tb, K), lambda j, i: (i, 0), **resident_kwargs),   # normalized embedding
            pl.BlockSpec((K, tn), lambda j, i: (0, j)),                      # streamed weight tile
            pl.BlockSpec((tb, 1), lambda j, i: (i, 0), **resident_kwargs),   # labels
        ]
        out_specs = pl.BlockSpec((tb, tn), lambda j, i: (i, j))
        return pl.pallas_call(
            kern,
            out_shape=jax.ShapeDtypeStruct((B, N), jnp.float32),
            grid_spec=pltpu.PrefetchScalarGridSpec(
                num_scalar_prefetch=0,
                grid=grid,
                in_specs=in_specs,
                out_specs=out_specs,
            ),
            compiler_params=pltpu.CompilerParams(
                dimension_semantics=("parallel", "parallel"),   # shards tiles across v7x's 2 TCs
                vmem_limit_bytes=vmem_limit_bytes,
            ),
            cost_estimate=cost,
        )(e_n, kernel, label2d)

    try:
        return build_and_run(True)
    except Exception:
        # pl.Buffered(1) single-buffering is a pure VMEM optimization; fall
        # back to the default double-buffered pipeline if this build rejects it.
        return build_and_run(False)


def _reference(embedding, kernel, label, s=64.0, m=0.4):
    e = embedding / jnp.maximum(
        jnp.linalg.norm(embedding, axis=1, keepdims=True), 1e-12)
    w = kernel / jnp.maximum(
        jnp.linalg.norm(kernel, axis=0, keepdims=True), 1e-12)
    cosine = e @ w
    valid = (label != -1)
    onehot = jax.nn.one_hot(jnp.where(valid, label, 0), kernel.shape[1],
                            dtype=cosine.dtype)
    cosine = cosine - m * onehot * valid[:, None].astype(cosine.dtype)
    return cosine * s


if __name__ == "__main__":
    in_features, out_features = 128, 640      # ragged vs 256-wide tiles (640 = 2*256 + 128)
    B = 16
    s_, m_ = 64.0, 0.4

    key = jax.random.PRNGKey(0)
    k_emb, k_w, k_lbl = jax.random.split(key, 3)

    embedding = jax.random.normal(k_emb, (B, in_features), dtype=jnp.float32)

    # Deterministic xavier_uniform-style init for the (in_features, out_features) kernel.
    limit = (6.0 / (in_features + out_features)) ** 0.5
    weight = jax.random.uniform(k_w, (in_features, out_features),
                                minval=-limit, maxval=limit, dtype=jnp.float32)

    # Labels in [0, out_features), with a couple of -1 ("ignore") entries.
    label = jax.random.randint(k_lbl, (B,), 0, out_features, dtype=jnp.int32)
    label = label.at[1].set(-1).at[5].set(-1)

    ref = _reference(embedding, weight, label, s=s_, m=m_)

    # Default path: bf16 weight streaming, auto (VMEM-capped, 256-aligned) tile.
    out = margin_softmax_classifier(embedding, weight, label, s=s_, m=m_)
    out = jax.block_until_ready(out)
    assert out.shape == (B, out_features)
    assert jnp.allclose(out, ref, atol=0.5, rtol=2e-2), "bf16 mismatch vs reference"

    # f32 streaming, multi-tile ragged N (640 -> 3 tiles of 256, masked tail writes).
    out_f32 = margin_softmax_classifier(embedding, weight, label, s=s_, m=m_,
                                        tn=256, matmul_dtype=jnp.float32)
    out_f32 = jax.block_until_ready(out_f32)
    assert out_f32.shape == (B, out_features)
    assert jnp.allclose(out_f32, ref, atol=2e-3, rtol=2e-3), "f32 mismatch vs reference"

    # 2-D grid path: batch tiles inner, weight tile resident across the batch loop.
    out_bt = margin_softmax_classifier(embedding, weight, label, s=s_, m=m_,
                                       tn=256, batch_tile=8,
                                       matmul_dtype=jnp.float32)
    out_bt = jax.block_until_ready(out_bt)
    assert out_bt.shape == (B, out_features)
    assert jnp.allclose(out_bt, ref, atol=2e-3, rtol=2e-3), "batch-tiled mismatch vs reference"

    print("KERNEL_OK")
</pallas_src>

<mosaic_0001>
module attributes {stable_mosaic.version = 11 : i64} {
  func.func @_margin_head_kernel(%arg0: i32, %arg1: i32, %arg2: memref<16x128xbf16, #tpu.memory_space<vmem>>, %arg3: memref<128x768xbf16, #tpu.memory_space<vmem>>, %arg4: memref<16x1xi32, #tpu.memory_space<vmem>>, %arg5: memref<16x768xf32, #tpu.memory_space<vmem>>) attributes {dimension_semantics = [#tpu.dimension_semantics<parallel>, #tpu.dimension_semantics<parallel>], iteration_bounds = array<i64: 1, 1>, scalar_prefetch = 0 : i64, scratch_operands = 0 : i64, tpu.core_type = #tpu.core_type<tc>, window_params = [{pipeline_mode = #tpu.pipeline_mode<synchronous>, transform_indices = @transform_0, window_bounds = array<i64: 16, 128>}, {transform_indices = @transform_1, window_bounds = array<i64: 128, 768>}, {pipeline_mode = #tpu.pipeline_mode<synchronous>, transform_indices = @transform_2, window_bounds = array<i64: 16, 1>}, {transform_indices = @transform_3, window_bounds = array<i64: 16, 768>}]} {
    %c0 = arith.constant 0 : index
    %c0_0 = arith.constant 0 : index
    %0 = vector.load %arg2[%c0, %c0_0] : memref<16x128xbf16, #tpu.memory_space<vmem>>, vector<16x128xbf16>
    %c0_1 = arith.constant 0 : index
    %c0_2 = arith.constant 0 : index
    %1 = vector.load %arg3[%c0_1, %c0_2] : memref<128x768xbf16, #tpu.memory_space<vmem>>, vector<128x768xbf16>
    %cst = arith.constant dense<0.000000e+00> : vector<16x768xf32>
    %2 = tpu.matmul %0, %1, %cst {dimension_numbers = #tpu.dot_dimension_numbers<[1], [0], [0], [1], [0, 0, 1, 1], [], []>} : vector<16x128xbf16>, vector<128x768xbf16>, vector<16x768xf32> -> vector<16x768xf32>
    %cst_3 = arith.constant 1.000000e+00 : bf16
    %3 = vector.broadcast %cst_3 : bf16 to vector<8x128xbf16>
    %4 = arith.mulf %1, %1 : vector<128x768xbf16>
    %cst_4 = arith.constant dense<0.000000e+00> : vector<8x768xf32>
    %5 = tpu.matmul %3, %4, %cst_4 {dimension_numbers = #tpu.dot_dimension_numbers<[1], [0], [0], [1], [0, 0, 1, 1], [], []>} : vector<8x128xbf16>, vector<128x768xbf16>, vector<8x768xf32> -> vector<8x768xf32>
    %6 = vector.extract_strided_slice %5 {offsets = [0, 0], sizes = [1, 768], strides = [1, 1]} : vector<8x768xf32> to vector<1x768xf32>
    %cst_5 = arith.constant 1.000000e-24 : f32
    %7 = vector.broadcast %cst_5 : f32 to vector<1x768xf32>
    %8 = arith.maximumf %6, %7 : vector<1x768xf32>
    %9 = math.rsqrt %8 : vector<1x768xf32>
    %cst_6 = arith.constant 6.400000e+01 : f32
    %10 = vector.broadcast %cst_6 : f32 to vector<1x768xf32>
    %11 = arith.mulf %10, %9 : vector<1x768xf32>
    %c0_7 = arith.constant 0 : index
    %c0_8 = arith.constant 0 : index
    %12 = vector.load %arg4[%c0_7, %c0_8] : memref<16x1xi32, #tpu.memory_space<vmem>>, vector<16x1xi32>
    %13 = tpu.iota {dimensions = array<i32: 1>} : vector<16x768xi32>
    %c768_i32 = arith.constant 768 : i32
    %14 = arith.muli %arg0, %c768_i32 : i32
    %15 = vector.broadcast %14 : i32 to vector<16x768xi32>
    %16 = arith.addi %13, %15 : vector<16x768xi32>
    %17 = vector.broadcast %12 : vector<16x1xi32> to vector<16x768xi32>
    %18 = arith.cmpi eq, %16, %17 : vector<16x768xi32>
    %c-1_i32 = arith.constant -1 : i32
    %19 = vector.broadcast %c-1_i32 : i32 to vector<16x1xi32>
    %20 = arith.cmpi ne, %12, %19 : vector<16x1xi32>
    %21 = vector.broadcast %20 : vector<16x1xi1> to vector<16x768xi1>
    %22 = arith.andi %18, %21 : vector<16x768xi1>
    %23 = vector.broadcast %11 : vector<1x768xf32> to vector<16x768xf32>
    %24 = arith.mulf %2, %23 : vector<16x768xf32>
    %25 = arith.extui %22 : vector<16x768xi1> to vector<16x768xi32>
    %26 = arith.sitofp %25 : vector<16x768xi32> to vector<16x768xf32>
    %cst_9 = arith.constant 2.560000e+01 : f32
    %27 = vector.broadcast %cst_9 : f32 to vector<16x768xf32>
    %28 = arith.mulf %27, %26 : vector<16x768xf32>
    %29 = arith.subf %24, %28 : vector<16x768xf32>
    %c0_10 = arith.constant 0 : index
    %c0_11 = arith.constant 0 : index
    %30 = vector.load %arg5[%c0_10, %c0_11] : memref<16x768xf32, #tpu.memory_space<vmem>>, vector<16x768xf32>
    tpu.vector_store %arg5[%c0_10, %c0_11], %29 {strides = array<i32>} : memref<16x768xf32, #tpu.memory_space<vmem>>, vector<16x768xf32>,
    return
  }
  func.func @transform_0(%arg0: i32, %arg1: i32) -> (i32, i32) {
    %c0_i32 = arith.constant 0 : i32
    %c0_i32_0 = arith.constant 0 : i32
    return %arg1, %c0_i32 : i32, i32
  }
  func.func @transform_1(%arg0: i32, %arg1: i32) -> (i32, i32) {
    %c0_i32 = arith.constant 0 : i32
    %c0_i32_0 = arith.constant 0 : i32
    return %c0_i32, %arg0 : i32, i32
  }
  func.func @transform_2(%arg0: i32, %arg1: i32) -> (i32, i32) {
    %c0_i32 = arith.constant 0 : i32
    %c0_i32_0 = arith.constant 0 : i32
    return %arg1, %c0_i32 : i32, i32
  }
  func.func @transform_3(%arg0: i32, %arg1: i32) -> (i32, i32) {
    %c0_i32 = arith.constant 0 : i32
    return %arg1, %arg0 : i32, i32
  }
}

module attributes {stable_mosaic.version = 11 : i64} {
  func.func @_margin_head_kernel(%arg0: i32, %arg1: i32, %arg2: memref<16x128xbf16, #tpu.memory_space<vmem>>, %arg3: memref<128x768xbf16, #tpu.memory_space<vmem>>, %arg4: memref<16x1xi32, #tpu.memory_space<vmem>>, %arg5: memref<16x768xf32, #tpu.memory_space<vmem>>) attributes {dimension_semantics = [#tpu.dimension_semantics<parallel>, #tpu.dimension_semantics<parallel>], iteration_bounds = array<i64: 1, 1>, scalar_prefetch = 0 : i64, scratch_operands = 0 : i64, tpu.core_type = #tpu.core_type<tc>, window_params = [{transform_indices = @transform_0, window_bounds = array<i64: 16, 128>}, {transform_indices = @transform_1, window_bounds = array<i64: 128, 768>}, {transform_indices = @transform_2, window_bounds = array<i64: 16, 1>}, {transform_indices = @transform_3, window_bounds = array<i64: 16, 768>}]} {
    %c0 = arith.constant 0 : index
    %c0_0 = arith.constant 0 : index
    %0 = vector.load %arg2[%c0, %c0_0] : memref<16x128xbf16, #tpu.memory_space<vmem>>, vector<16x128xbf16>
    %c0_1 = arith.constant 0 : index
    %c0_2 = arith.constant 0 : index
    %1 = vector.load %arg3[%c0_1, %c0_2] : memref<128x768xbf16, #tpu.memory_space<vmem>>, vector<128x768xbf16>
    %cst = arith.constant dense<0.000000e+00> : vector<16x768xf32>
    %2 = tpu.matmul %0, %1, %cst {dimension_numbers = #tpu.dot_dimension_numbers<[1], [0], [0], [1], [0, 0, 1, 1], [], []>} : vector<16x128xbf16>, vector<128x768xbf16>, vector<16x768xf32> -> vector<16x768xf32>
    %cst_3 = arith.constant 1.000000e+00 : bf16
    %3 = vector.broadcast %cst_3 : bf16 to vector<8x128xbf16>
    %4 = arith.mulf %1, %1 : vector<128x768xbf16>
    %cst_4 = arith.constant dense<0.000000e+00> : vector<8x768xf32>
    %5 = tpu.matmul %3, %4, %cst_4 {dimension_numbers = #tpu.dot_dimension_numbers<[1], [0], [0], [1], [0, 0, 1, 1], [], []>} : vector<8x128xbf16>, vector<128x768xbf16>, vector<8x768xf32> -> vector<8x768xf32>
    %6 = vector.extract_strided_slice %5 {offsets = [0, 0], sizes = [1, 768], strides = [1, 1]} : vector<8x768xf32> to vector<1x768xf32>
    %cst_5 = arith.constant 1.000000e-24 : f32
    %7 = vector.broadcast %cst_5 : f32 to vector<1x768xf32>
    %8 = arith.maximumf %6, %7 : vector<1x768xf32>
    %9 = math.rsqrt %8 : vector<1x768xf32>
    %cst_6 = arith.constant 6.400000e+01 : f32
    %10 = vector.broadcast %cst_6 : f32 to vector<1x768xf32>
    %11 = arith.mulf %10, %9 : vector<1x768xf32>
    %c0_7 = arith.constant 0 : index
    %c0_8 = arith.constant 0 : index
    %12 = vector.load %arg4[%c0_7, %c0_8] : memref<16x1xi32, #tpu.memory_space<vmem>>, vector<16x1xi32>
    %13 = tpu.iota {dimensions = array<i32: 1>} : vector<16x768xi32>
    %c768_i32 = arith.constant 768 : i32
    %14 = arith.muli %arg0, %c768_i32 : i32
    %15 = vector.broadcast %14 : i32 to vector<16x768xi32>
    %16 = arith.addi %13, %15 : vector<16x768xi32>
    %17 = vector.broadcast %12 : vector<16x1xi32> to vector<16x768xi32>
    %18 = arith.cmpi eq, %16, %17 : vector<16x768xi32>
    %c-1_i32 = arith.constant -1 : i32
    %19 = vector.broadcast %c-1_i32 : i32 to vector<16x1xi32>
    %20 = arith.cmpi ne, %12, %19 : vector<16x1xi32>
    %21 = vector.broadcast %20 : vector<16x1xi1> to vector<16x768xi1>
    %22 = arith.andi %18, %21 : vector<16x768xi1>
    %23 = vector.broadcast %11 : vector<1x768xf32> to vector<16x768xf32>
    %24 = arith.mulf %2, %23 : vector<16x768xf32>
    %25 = arith.extui %22 : vector<16x768xi1> to vector<16x768xi32>
    %26 = arith.sitofp %25 : vector<16x768xi32> to vector<16x768xf32>
    %cst_9 = arith.constant 2.560000e+01 : f32
    %27 = vector.broadcast %cst_9 : f32 to vector<16x768xf32>
    %28 = arith.mulf %27, %26 : vector<16x768xf32>
    %29 = arith.subf %24, %28 : vector<16x768xf32>
    %c0_10 = arith.constant 0 : index
    %c0_11 = arith.constant 0 : index
    %30 = vector.load %arg5[%c0_10, %c0_11] : memref<16x768xf32, #tpu.memory_space<vmem>>, vector<16x768xf32>
    tpu.vector_store %arg5[%c0_10, %c0_11], %29 {strides = array<i32>} : memref<16x768xf32, #tpu.memory_space<vmem>>, vector<16x768xf32>,
    return
  }
  func.func @transform_0(%arg0: i32, %arg1: i32) -> (i32, i32) {
    %c0_i32 = arith.constant 0 : i32
    %c0_i32_0 = arith.constant 0 : i32
    return %arg1, %c0_i32 : i32, i32
  }
  func.func @transform_1(%arg0: i32, %arg1: i32) -> (i32, i32) {
    %c0_i32 = arith.constant 0 : i32
    %c0_i32_0 = arith.constant 0 : i32
    return %c0_i32, %arg0 : i32, i32
  }
  func.func @transform_2(%arg0: i32, %arg1: i32) -> (i32, i32) {
    %c0_i32 = arith.constant 0 : i32
    %c0_i32_0 = arith.constant 0 : i32
    return %arg1, %c0_i32 : i32, i32
  }
  func.func @transform_3(%arg0: i32, %arg1: i32) -> (i32, i32) {
    %c0_i32 = arith.constant 0 : i32
    return %arg1, %arg0 : i32, i32
  }
}

</mosaic_0001>

<llo_original>
// kernel: tpu_custom_call.1
$region0: #{tpu_custom_call.1}
  #allocation0 [shape = 'u32[]', space=smem, size = 0x4, offset = 0x4, fixed_abs, tag = 'smem constant byte address 0x4 - core index']
  #allocation1 [shape = 'u32[144,128]{1,0:T(1,128)}', space=vmem, size = 0x12000, scoped, tag = 'internal scratch']
  %s0 = inlined_call_operand.vmem [shape: bf16[16,128], index: 0, kind: input, shape index: {}]
  %s1 = inlined_call_operand.hbm [shape: bf16[128,640], index: 1, kind: input, shape index: {}]
  %s2 = inlined_call_operand.vmem [shape: s32[16,1], index: 2, kind: input, shape index: {}]
  %s3 = inlined_call_operand.hbm [shape: f32[16,640], index: 3, kind: output, shape index: {}]
  %s4 = sld [smem:[#allocation0]]
  $region26: #{tpu_custom_call.1} parent=0
    _
  %s6 = ssub.s32 1, %s4
  %s7 = scalar_select 0, %s6, %s4
  $region1: #{tpu_custom_call.1} parent=0
    #allocation2 [shape = 'u8[196608]{0}', space=vmem, size = 0x30000, scoped, tag = 'input window, operand 1, single buffered']
    #allocation3 [shape = 's32[1]{0}', space=sflag, size = 0x4, scoped, tag = 'scoped memory for tpu_custom_call.1']
    #allocation4 [shape = 's32[1]{0}', space=sflag, size = 0x4, scoped, tag = 'scoped memory for tpu_custom_call.1']
    #allocation5 [shape = 'u8[49152]{0}', space=vmem, size = 0xc000, scoped, tag = 'output window, operand 0, single buffered']
    %8 = vsyncpa [#allocation3], 0
    %9 = vsyncpa [#allocation4], 0
    // Predicated region
    $region2: #{tpu_custom_call.1} parent=1 // pred_check
      _
    $region3: #{tpu_custom_call.1} parent=1 // pred_check_branch
      %11 = sbr.rel (0) target = $region5
    $region4: #{tpu_custom_call.1} parent=1 // pred_region
      _
    $region5: #{tpu_custom_call.1} parent=1 // pred_fallthru
      _
    // Predicated region
    $region6: #{tpu_custom_call.1} parent=1 // pred_check
      _
    $region7: #{tpu_custom_call.1} parent=1 // pred_check_branch
      %13 = sbr.rel (0) target = $region9
    $region8: #{tpu_custom_call.1} parent=1 // pred_region
      %s15 = ssub.s32 6144, 5120
      %16 = vsyncadd [#allocation3], %s15
      %s17 = sshll.u32 [#allocation2], 4
      %s18 = int_to_ptr.vmem [resolvable:$true] %s17
      %23 = dma.hbm_to_vmem [thread:$0]  %s1, 5120, %s18, [#allocation3], 320, 384, 20
    $region9: #{tpu_custom_call.1} parent=1 // pred_fallthru
      _
    // Predicated region
    $region10: #{tpu_custom_call.1} parent=1 // pred_check
      _
    $region11: #{tpu_custom_call.1} parent=1 // pred_check_branch
      %25 = sbr.rel (0) target = $region13
    $region12: #{tpu_custom_call.1} parent=1 // pred_region
      _
    $region13: #{tpu_custom_call.1} parent=1 // pred_fallthru
      _
    // Predicated region
    $region14: #{tpu_custom_call.1} parent=1 // pred_check
      _
    $region15: #{tpu_custom_call.1} parent=1 // pred_check_branch
      %27 = sbr.rel (0) target = $region17
    $region16: #{tpu_custom_call.1} parent=1 // pred_region
      %28 = dma.done [#allocation3], 6144
    $region17: #{tpu_custom_call.1} parent=1 // pred_fallthru
      _
    %v31 = vld [vmem:[%s0] sm:$0xf]
    %v32 = vld [vmem:[%s0 + $0x4] sm:$0xf]
    %v33 = vld [vmem:[#allocation2] sm:$0xff]
    %v34 = vld [vmem:[#allocation2 + $0x8] sm:$0xff]
    %v35 = vld [vmem:[#allocation2 + $0x10] sm:$0xff]
    %v36 = vld [vmem:[#allocation2 + $0x18] sm:$0xff]
    %v37 = vld [vmem:[#allocation2 + $0x20] sm:$0xff]
    %v38 = vld [vmem:[#allocation2 + $0x28] sm:$0xff]
    %v39 = vld [vmem:[#allocation2 + $0x30] sm:$0xff]
    %v40 = vld [vmem:[#allocation2 + $0x38] sm:$0xff]
    %v41 = vld [vmem:[#allocation2 + $0x40] sm:$0xff]
    %v42 = vld [vmem:[#allocation2 + $0x48] sm:$0xff]
    %v43 = vld [vmem:[#allocation2 + $0x50] sm:$0xff]
    %v44 = vld [vmem:[#allocation2 + $0x58] sm:$0xff]
    %v45 = vld [vmem:[#allocation2 + $0x60] sm:$0xff]
    %v46 = vld [vmem:[#allocation2 + $0x68] sm:$0xff]
    %v47 = vld [vmem:[#allocation2 + $0x70] sm:$0xff]
    %v48 = vld [vmem:[#allocation2 + $0x78] sm:$0xff]
    %v49 = vld [vmem:[#allocation2 + $0x80] sm:$0xff]
    %v50 = vld [vmem:[#allocation2 + $0x88] sm:$0xff]
    %v51 = vld [vmem:[#allocation2 + $0x90] sm:$0xff]
    %v52 = vld [vmem:[#allocation2 + $0x98] sm:$0xff]
    %v53 = vld [vmem:[#allocation2 + $0xa0] sm:$0xff]
    %v54 = vld [vmem:[#allocation2 + $0xa8] sm:$0xff]
    %v55 = vld [vmem:[#allocation2 + $0xb0] sm:$0xff]
    %v56 = vld [vmem:[#allocation2 + $0xb8] sm:$0xff]
    %v57 = vld [vmem:[#allocation2 + $0xc0] sm:$0xff]
    %v58 = vld [vmem:[#allocation2 + $0xc8] sm:$0xff]
    %v59 = vld [vmem:[#allocation2 + $0xd0] sm:$0xff]
    %v60 = vld [vmem:[#allocation2 + $0xd8] sm:$0xff]
    %v61 = vld [vmem:[#allocation2 + $0xe0] sm:$0xff]
    %v62 = vld [vmem:[#allocation2 + $0xe8] sm:$0xff]
    %v63 = vld [vmem:[#allocation2 + $0xf0] sm:$0xff]
    %v64 = vld [vmem:[#allocation2 + $0xf8] sm:$0xff]
    %v65 = vld [vmem:[#allocation2 + $0x100] sm:$0xff]
    %v66 = vld [vmem:[#allocation2 + $0x108] sm:$0xff]
    %v67 = vld [vmem:[#allocation2 + $0x110] sm:$0xff]
    %v68 = vld [vmem:[#allocation2 + $0x118] sm:$0xff]
    %v69 = vld [vmem:[#allocation2 + $0x120] sm:$0xff]
    %v70 = vld [vmem:[#allocation2 + $0x128] sm:$0xff]
    %v71 = vld [vmem:[#allocation2 + $0x130] sm:$0xff]
    %v72 = vld [vmem:[#allocation2 + $0x138] sm:$0xff]
    %v73 = vld [vmem:[#allocation2 + $0x140] sm:$0xff]
    %v74 = vld [vmem:[#allocation2 + $0x148] sm:$0xff]
    %v75 = vld [vmem:[#allocation2 + $0x150] sm:$0xff]
    %v76 = vld [vmem:[#allocation2 + $0x158] sm:$0xff]
    %v77 = vld [vmem:[#allocation2 + $0x160] sm:$0xff]
    %v78 = vld [vmem:[#allocation2 + $0x168] sm:$0xff]
    %v79 = vld [vmem:[#allocation2 + $0x170] sm:$0xff]
    %v80 = vld [vmem:[#allocation2 + $0x178] sm:$0xff]
    %v83 = vunpack.c.l.b16 %v31
    %v84 = vunpack.c.l.b16 %v32
    %v85 = vpack.c.b16 %v84, %v83
    %v135 = vunpack.c.l.b16 %v33
    %v136 = vunpack.c.h.b16 %v33
    %v137 = vunpack.c.l.b16 %v34
    %v138 = vunpack.c.h.b16 %v34
    %v139 = vunpack.c.l.b16 %v35
    %v140 = vunpack.c.h.b16 %v35
    %v141 = vunpack.c.l.b16 %v36
    %v142 = vunpack.c.h.b16 %v36
    %v143 = vunpack.c.l.b16 %v37
    %v144 = vunpack.c.h.b16 %v37
    %v145 = vunpack.c.l.b16 %v38
    %v146 = vunpack.c.h.b16 %v38
    %v147 = vunpack.c.l.b16 %v39
    %v148 = vunpack.c.h.b16 %v39
    %v149 = vunpack.c.l.b16 %v40
    %v150 = vunpack.c.h.b16 %v40
    %v151 = vunpack.c.l.b16 %v41
    %v152 = vunpack.c.h.b16 %v41
    %v153 = vunpack.c.l.b16 %v42
    %v154 = vunpack.c.h.b16 %v42
    %v155 = vunpack.c.l.b16 %v43
    %v156 = vunpack.c.h.b16 %v43
    %v157 = vunpack.c.l.b16 %v44
    %v158 = vunpack.c.h.b16 %v44
    %v159 = vunpack.c.l.b16 %v45
    %v160 = vunpack.c.h.b16 %v45
    %v161 = vunpack.c.l.b16 %v46
    %v162 = vunpack.c.h.b16 %v46
    %v163 = vunpack.c.l.b16 %v47
    %v164 = vunpack.c.h.b16 %v47
    %v165 = vunpack.c.l.b16 %v48
    %v166 = vunpack.c.h.b16 %v48
    %v167 = vunpack.c.l.b16 %v49
    %v168 = vunpack.c.h.b16 %v49
    %v169 = vunpack.c.l.b16 %v50
    %v170 = vunpack.c.h.b16 %v50
    %v171 = vunpack.c.l.b16 %v51
    %v172 = vunpack.c.h.b16 %v51
    %v173 = vunpack.c.l.b16 %v52
    %v174 = vunpack.c.h.b16 %v52
    %v175 = vunpack.c.l.b16 %v53
    %v176 = vunpack.c.h.b16 %v53
    %v177 = vunpack.c.l.b16 %v54
    %v178 = vunpack.c.h.b16 %v54
    %v179 = vunpack.c.l.b16 %v55
    %v180 = vunpack.c.h.b16 %v55
    %v181 = vunpack.c.l.b16 %v56
    %v182 = vunpack.c.h.b16 %v56
    %v183 = vunpack.c.l.b16 %v57
    %v184 = vunpack.c.h.b16 %v57
    %v185 = vunpack.c.l.b16 %v58
    %v186 = vunpack.c.h.b16 %v58
    %v187 = vunpack.c.l.b16 %v59
    %v188 = vunpack.c.h.b16 %v59
    %v189 = vunpack.c.l.b16 %v60
    %v190 = vunpack.c.h.b16 %v60
    %v191 = vunpack.c.l.b16 %v61
    %v192 = vunpack.c.h.b16 %v61
    %v193 = vunpack.c.l.b16 %v62
    %v194 = vunpack.c.h.b16 %v62
    %v195 = vunpack.c.l.b16 %v63
    %v196 = vunpack.c.h.b16 %v63
    %v197 = vunpack.c.l.b16 %v64
    %v198 = vunpack.c.h.b16 %v64
    %v199 = vunpack.c.l.b16 %v65
    %v200 = vunpack.c.h.b16 %v65
    %v201 = vunpack.c.l.b16 %v66
    %v202 = vunpack.c.h.b16 %v66
    %v203 = vunpack.c.l.b16 %v67
    %v204 = vunpack.c.h.b16 %v67
    %v205 = vunpack.c.l.b16 %v68
    %v206 = vunpack.c.h.b16 %v68
    %v207 = vunpack.c.l.b16 %v69
    %v208 = vunpack.c.h.b16 %v69
    %v209 = vunpack.c.l.b16 %v70
    %v210 = vunpack.c.h.b16 %v70
    %v211 = vunpack.c.l.b16 %v71
    %v212 = vunpack.c.h.b16 %v71
    %v213 = vunpack.c.l.b16 %v72
    %v214 = vunpack.c.h.b16 %v72
    %v215 = vunpack.c.l.b16 %v73
    %v216 = vunpack.c.h.b16 %v73
    %v217 = vunpack.c.l.b16 %v74
    %v218 = vunpack.c.h.b16 %v74
    %v219 = vunpack.c.l.b16 %v75
    %v220 = vunpack.c.h.b16 %v75
    %v221 = vunpack.c.l.b16 %v76
    %v222 = vunpack.c.h.b16 %v76
    %v223 = vunpack.c.l.b16 %v77
    %v224 = vunpack.c.h.b16 %v77
    %v225 = vunpack.c.l.b16 %v78
    %v226 = vunpack.c.h.b16 %v78
    %v227 = vunpack.c.l.b16 %v79
    %v228 = vunpack.c.h.b16 %v79
    %v229 = vunpack.c.l.b16 %v80
    %v230 = vunpack.c.h.b16 %v80
    %v231 = vpack.c.b16 %v141, %v135
    %v232 = vpack.c.b16 %v142, %v136
    %v233 = vpack.c.b16 %v143, %v137
    %v234 = vpack.c.b16 %v144, %v138
    %v235 = vpack.c.b16 %v145, %v139
    %v236 = vpack.c.b16 %v146, %v140
    %v237 = vpack.c.b16 %v153, %v147
    %v238 = vpack.c.b16 %v154, %v148
    %v239 = vpack.c.b16 %v155, %v149
    %v240 = vpack.c.b16 %v156, %v150
    %v241 = vpack.c.b16 %v157, %v151
    %v242 = vpack.c.b16 %v158, %v152
    %v243 = vpack.c.b16 %v165, %v159
    %v244 = vpack.c.b16 %v166, %v160
    %v245 = vpack.c.b16 %v167, %v161
    %v246 = vpack.c.b16 %v168, %v162
    %v247 = vpack.c.b16 %v169, %v163
    %v248 = vpack.c.b16 %v170, %v164
    %v249 = vpack.c.b16 %v177, %v171
    %v250 = vpack.c.b16 %v178, %v172
    %v251 = vpack.c.b16 %v179, %v173
    %v252 = vpack.c.b16 %v180, %v174
    %v253 = vpack.c.b16 %v181, %v175
    %v254 = vpack.c.b16 %v182, %v176
    %v255 = vpack.c.b16 %v189, %v183
    %v256 = vpack.c.b16 %v190, %v184
    %v257 = vpack.c.b16 %v191, %v185
    %v258 = vpack.c.b16 %v192, %v186
    %v259 = vpack.c.b16 %v193, %v187
    %v260 = vpack.c.b16 %v194, %v188
    %v261 = vpack.c.b16 %v201, %v195
    %v262 = vpack.c.b16 %v202, %v196
    %v263 = vpack.c.b16 %v203, %v197
    %v264 = vpack.c.b16 %v204, %v198
    %v265 = vpack.c.b16 %v205, %v199
    %v266 = vpack.c.b16 %v206, %v200
    %v267 = vpack.c.b16 %v213, %v207
    %v268 = vpack.c.b16 %v214, %v208
    %v269 = vpack.c.b16 %v215, %v209
    %v270 = vpack.c.b16 %v216, %v210
    %v271 = vpack.c.b16 %v217, %v211
    %v272 = vpack.c.b16 %v218, %v212
    %v273 = vpack.c.b16 %v225, %v219
    %v274 = vpack.c.b16 %v226, %v220
    %v275 = vpack.c.b16 %v227, %v221
    %v276 = vpack.c.b16 %v228, %v222
    %v277 = vpack.c.b16 %v229, %v223
    %v278 = vpack.c.b16 %v230, %v224
    %327 = vmatprep.subr.bf16.mxu0 %v232
    %328 = vmatpush1.bf16.msra.mxu0 %v231
    %329 = vmatprep.subr.bf16.mxu0 %v238
    %330 = vmatpush1.bf16.msra.mxu0 %v237
    %331 = vmatprep.subr.bf16.mxu0 %v244
    %332 = vmatpush1.bf16.msra.mxu0 %v243
    %333 = vmatprep.subr.bf16.mxu0 %v250
    %334 = vmatpush1.bf16.msra.mxu0 %v249
    %335 = vmatprep.subr.bf16.mxu0 %v256
    %336 = vmatpush1.bf16.msra.mxu0 %v255
    %337 = vmatprep.subr.bf16.mxu0 %v262
    %338 = vmatpush1.bf16.msra.mxu0 %v261
    %339 = vmatprep.subr.bf16.mxu0 %v268
    %340 = vmatpush1.bf16.msra.mxu0 %v267
    %341 = vmatprep.subr.bf16.mxu0 %v274
    %342 = vmatpush1.bf16.msra.mxu0 %v273
    %343 = vmatprep.subr.bf16.mxu0 0
    %344 = vmatpush1.bf16.msra.mxu0 0
    %345 = vmatprep.subr.bf16.mxu0 0
    %346 = vmatpush1.bf16.msra.mxu0 0
    %347 = vmatprep.subr.bf16.mxu0 0
    %348 = vmatpush1.bf16.msra.mxu0 0
    %349 = vmatprep.subr.bf16.mxu0 0
    %350 = vmatpush1.bf16.msra.mxu0 0
    %351 = vmatprep.subr.bf16.mxu0 0
    %352 = vmatpush1.bf16.msra.mxu0 0
    %353 = vmatprep.subr.bf16.mxu0 0
    %354 = vmatpush1.bf16.msra.mxu0 0
    %355 = vmatprep.subr.bf16.mxu0 0
    %356 = vmatpush1.bf16.msra.mxu0 0
    %357 = vmatprep.subr.bf16.mxu0 0
    %358 = vmatpush1.bf16.msra.mxu0 0
    %359 = vmatprep.mubr.bf16.mxu0 0
    %360 = vmatmul.mubr.bf16.gmra.mrb[0].mxu0 %v85
    %v361 = vpop.f32.mrb[0].mxu0
    %v362 = vadd.f32 0.0, %v361
    %v363 = vpop.f32.mrb[0].mxu0
    %v364 = vadd.f32 0.0, %v363
    %v365 = vpop.f32.mrb[0].mxu0
    %v366 = vadd.f32 0.0, %v365
    %v367 = vpop.f32.mrb[0].mxu0
    %v368 = vadd.f32 0.0, %v367
    %369 = vdwg.mxu0
    %370 = vmatprep.subr.bf16.mxu0 %v234
    %371 = vmatpush1.bf16.msra.mxu0 %v233
    %372 = vmatprep.subr.bf16.mxu0 %v240
    %373 = vmatpush1.bf16.msra.mxu0 %v239
    %374 = vmatprep.subr.bf16.mxu0 %v246
    %375 = vmatpush1.bf16.msra.mxu0 %v245
    %376 = vmatprep.subr.bf16.mxu0 %v252
    %377 = vmatpush1.bf16.msra.mxu0 %v251
    %378 = vmatprep.subr.bf16.mxu0 %v258
    %379 = vmatpush1.bf16.msra.mxu0 %v257
    %380 = vmatprep.subr.bf16.mxu0 %v264
    %381 = vmatpush1.bf16.msra.mxu0 %v263
    %382 = vmatprep.subr.bf16.mxu0 %v270
    %383 = vmatpush1.bf16.msra.mxu0 %v269
    %384 = vmatprep.subr.bf16.mxu0 %v276
    %385 = vmatpush1.bf16.msra.mxu0 %v275
    %386 = vmatprep.subr.bf16.mxu0 0
    %387 = vmatpush1.bf16.msra.mxu0 0
    %388 = vmatprep.subr.bf16.mxu0 0
    %389 = vmatpush1.bf16.msra.mxu0 0
    %390 = vmatprep.subr.bf16.mxu0 0
    %391 = vmatpush1.bf16.msra.mxu0 0
    %392 = vmatprep.subr.bf16.mxu0 0
    %393 = vmatpush1.bf16.msra.mxu0 0
    %394 = vmatprep.subr.bf16.mxu0 0
    %395 = vmatpush1.bf16.msra.mxu0 0
    %396 = vmatprep.subr.bf16.mxu0 0
    %397 = vmatpush1.bf16.msra.mxu0 0
    %398 = vmatprep.subr.bf16.mxu0 0
    %399 = vmatpush1.bf16.msra.mxu0 0
    %400 = vmatprep.subr.bf16.mxu0 0
    %401 = vmatpush1.bf16.msra.mxu0 0
    %402 = vmatprep.mubr.bf16.mxu0 0
    %403 = vmatmul.mubr.bf16.gmra.mrb[0].mxu0 %v85
    %v404 = vpop.f32.mrb[0].mxu0
    %v405 = vadd.f32 0.0, %v404
    %v406 = vpop.f32.mrb[0].mxu0
    %v407 = vadd.f32 0.0, %v406
    %v408 = vpop.f32.mrb[0].mxu0
    %v409 = vadd.f32 0.0, %v408
    %v410 = vpop.f32.mrb[0].mxu0
    %v411 = vadd.f32 0.0, %v410
    %412 = vdwg.mxu0
    %413 = vmatprep.subr.bf16.mxu0 %v236
    %414 = vmatpush1.bf16.msra.mxu0 %v235
    %415 = vmatprep.subr.bf16.mxu0 %v242
    %416 = vmatpush1.bf16.msra.mxu0 %v241
    %417 = vmatprep.subr.bf16.mxu0 %v248
    %418 = vmatpush1.bf16.msra.mxu0 %v247
    %419 = vmatprep.subr.bf16.mxu0 %v254
    %420 = vmatpush1.bf16.msra.mxu0 %v253
    %421 = vmatprep.subr.bf16.mxu0 %v260
    %422 = vmatpush1.bf16.msra.mxu0 %v259
    %423 = vmatprep.subr.bf16.mxu0 %v266
    %424 = vmatpush1.bf16.msra.mxu0 %v265
    %425 = vmatprep.subr.bf16.mxu0 %v272
    %426 = vmatpush1.bf16.msra.mxu0 %v271
    %427 = vmatprep.subr.bf16.mxu0 %v278
    %428 = vmatpush1.bf16.msra.mxu0 %v277
    %429 = vmatprep.subr.bf16.mxu0 0
    %430 = vmatpush1.bf16.msra.mxu0 0
    %431 = vmatprep.subr.bf16.mxu0 0
    %432 = vmatpush1.bf16.msra.mxu0 0
    %433 = vmatprep.subr.bf16.mxu0 0
    %434 = vmatpush1.bf16.msra.mxu0 0
    %435 = vmatprep.subr.bf16.mxu0 0
    %436 = vmatpush1.bf16.msra.mxu0 0
    %437 = vmatprep.subr.bf16.mxu0 0
    %438 = vmatpush1.bf16.msra.mxu0 0
    %439 = vmatprep.subr.bf16.mxu0 0
    %440 = vmatpush1.bf16.msra.mxu0 0
    %441 = vmatprep.subr.bf16.mxu0 0
    %442 = vmatpush1.bf16.msra.mxu0 0
    %443 = vmatprep.subr.bf16.mxu0 0
    %444 = vmatpush1.bf16.msra.mxu0 0
    %445 = vmatprep.mubr.bf16.mxu0 0
    %446 = vmatmul.mubr.bf16.gmra.mrb[0].mxu0 %v85
    %v447 = vpop.f32.mrb[0].mxu0
    %v448 = vadd.f32 0.0, %v447
    %v449 = vpop.f32.mrb[0].mxu0
    %v450 = vadd.f32 0.0, %v449
    %v451 = vpop.f32.mrb[0].mxu0
    %v452 = vadd.f32 0.0, %v451
    %v453 = vpop.f32.mrb[0].mxu0
    %v454 = vadd.f32 0.0, %v453
    %455 = vdwg.mxu0
    %v456 = vmul.bf16 %v33, %v33
    %v457 = vmul.bf16 %v34, %v34
    %v458 = vmul.bf16 %v35, %v35
    %v459 = vmul.bf16 %v36, %v36
    %v460 = vmul.bf16 %v37, %v37
    %v461 = vmul.bf16 %v38, %v38
    %v462 = vmul.bf16 %v39, %v39
    %v463 = vmul.bf16 %v40, %v40
    %v464 = vmul.bf16 %v41, %v41
    %v465 = vmul.bf16 %v42, %v42
    %v466 = vmul.bf16 %v43, %v43
    %v467 = vmul.bf16 %v44, %v44
    %v468 = vmul.bf16 %v45, %v45
    %v469 = vmul.bf16 %v46, %v46
    %v470 = vmul.bf16 %v47, %v47
    %v471 = vmul.bf16 %v48, %v48
    %v472 = vmul.bf16 %v49, %v49
    %v473 = vmul.bf16 %v50, %v50
    %v474 = vmul.bf16 %v51, %v51
    %v475 = vmul.bf16 %v52, %v52
    %v476 = vmul.bf16 %v53, %v53
    %v477 = vmul.bf16 %v54, %v54
    %v478 = vmul.bf16 %v55, %v55
    %v479 = vmul.bf16 %v56, %v56
    %v480 = vmul.bf16 %v57, %v57
    %v481 = vmul.bf16 %v58, %v58
    %v482 = vmul.bf16 %v59, %v59
    %v483 = vmul.bf16 %v60, %v60
    %v484 = vmul.bf16 %v61, %v61
    %v485 = vmul.bf16 %v62, %v62
    %v486 = vmul.bf16 %v63, %v63
    %v487 = vmul.bf16 %v64, %v64
    %v488 = vmul.bf16 %v65, %v65
    %v489 = vmul.bf16 %v66, %v66
    %v490 = vmul.bf16 %v67, %v67
    %v491 = vmul.bf16 %v68, %v68
    %v492 = vmul.bf16 %v69, %v69
    %v493 = vmul.bf16 %v70, %v70
    %v494 = vmul.bf16 %v71, %v71
    %v495 = vmul.bf16 %v72, %v72
    %v496 = vmul.bf16 %v73, %v73
    %v497 = vmul.bf16 %v74, %v74
    %v498 = vmul.bf16 %v75, %v75
    %v499 = vmul.bf16 %v76, %v76
    %v500 = vmul.bf16 %v77, %v77
    %v501 = vmul.bf16 %v78, %v78
    %v502 = vmul.bf16 %v79, %v79
    %v503 = vmul.bf16 %v80, %v80
    %v552 = vunpack.c.l.b16 %v456
    %v553 = vunpack.c.h.b16 %v456
    %v554 = vunpack.c.l.b16 %v457
    %v555 = vunpack.c.h.b16 %v457
    %v556 = vunpack.c.l.b16 %v458
    %v557 = vunpack.c.h.b16 %v458
    %v558 = vunpack.c.l.b16 %v459
    %v559 = vunpack.c.h.b16 %v459
    %v560 = vunpack.c.l.b16 %v460
    %v561 = vunpack.c.h.b16 %v460
    %v562 = vunpack.c.l.b16 %v461
    %v563 = vunpack.c.h.b16 %v461
    %v564 = vunpack.c.l.b16 %v462
    %v565 = vunpack.c.h.b16 %v462
    %v566 = vunpack.c.l.b16 %v463
    %v567 = vunpack.c.h.b16 %v463
    %v568 = vunpack.c.l.b16 %v464
    %v569 = vunpack.c.h.b16 %v464
    %v570 = vunpack.c.l.b16 %v465
    %v571 = vunpack.c.h.b16 %v465
    %v572 = vunpack.c.l.b16 %v466
    %v573 = vunpack.c.h.b16 %v466
    %v574 = vunpack.c.l.b16 %v467
    %v575 = vunpack.c.h.b16 %v467
    %v576 = vunpack.c.l.b16 %v468
    %v577 = vunpack.c.h.b16 %v468
    %v578 = vunpack.c.l.b16 %v469
    %v579 = vunpack.c.h.b16 %v469
    %v580 = vunpack.c.l.b16 %v470
    %v581 = vunpack.c.h.b16 %v470
    %v582 = vunpack.c.l.b16 %v471
    %v583 = vunpack.c.h.b16 %v471
    %v584 = vunpack.c.l.b16 %v472
    %v585 = vunpack.c.h.b16 %v472
    %v586 = vunpack.c.l.b16 %v473
    %v587 = vunpack.c.h.b16 %v473
    %v588 = vunpack.c.l.b16 %v474
    %v589 = vunpack.c.h.b16 %v474
    %v590 = vunpack.c.l.b16 %v475
    %v591 = vunpack.c.h.b16 %v475
    %v592 = vunpack.c.l.b16 %v476
    %v593 = vunpack.c.h.b16 %v476
    %v594 = vunpack.c.l.b16 %v477
    %v595 = vunpack.c.h.b16 %v477
    %v596 = vunpack.c.l.b16 %v478
    %v597 = vunpack.c.h.b16 %v478
    %v598 = vunpack.c.l.b16 %v479
    %v599 = vunpack.c.h.b16 %v479
    %v600 = vunpack.c.l.b16 %v480
    %v601 = vunpack.c.h.b16 %v480
    %v602 = vunpack.c.l.b16 %v481
    %v603 = vunpack.c.h.b16 %v481
    %v604 = vunpack.c.l.b16 %v482
    %v605 = vunpack.c.h.b16 %v482
    %v606 = vunpack.c.l.b16 %v483
    %v607 = vunpack.c.h.b16 %v483
    %v608 = vunpack.c.l.b16 %v484
    %v609 = vunpack.c.h.b16 %v484
    %v610 = vunpack.c.l.b16 %v485
    %v611 = vunpack.c.h.b16 %v485
    %v612 = vunpack.c.l.b16 %v486
    %v613 = vunpack.c.h.b16 %v486
    %v614 = vunpack.c.l.b16 %v487
    %v615 = vunpack.c.h.b16 %v487
    %v616 = vunpack.c.l.b16 %v488
    %v617 = vunpack.c.h.b16 %v488
    %v618 = vunpack.c.l.b16 %v489
    %v619 = vunpack.c.h.b16 %v489
    %v620 = vunpack.c.l.b16 %v490
    %v621 = vunpack.c.h.b16 %v490
    %v622 = vunpack.c.l.b16 %v491
    %v623 = vunpack.c.h.b16 %v491
    %v624 = vunpack.c.l.b16 %v492
    %v625 = vunpack.c.h.b16 %v492
    %v626 = vunpack.c.l.b16 %v493
    %v627 = vunpack.c.h.b16 %v493
    %v628 = vunpack.c.l.b16 %v494
    %v629 = vunpack.c.h.b16 %v494
    %v630 = vunpack.c.l.b16 %v495
    %v631 = vunpack.c.h.b16 %v495
    %v632 = vunpack.c.l.b16 %v496
    %v633 = vunpack.c.h.b16 %v496
    %v634 = vunpack.c.l.b16 %v497
    %v635 = vunpack.c.h.b16 %v497
    %v636 = vunpack.c.l.b16 %v498
    %v637 = vunpack.c.h.b16 %v498
    %v638 = vunpack.c.l.b16 %v499
    %v639 = vunpack.c.h.b16 %v499
    %v640 = vunpack.c.l.b16 %v500
    %v641 = vunpack.c.h.b16 %v500
    %v642 = vunpack.c.l.b16 %v501
    %v643 = vunpack.c.h.b16 %v501
    %v644 = vunpack.c.l.b16 %v502
    %v645 = vunpack.c.h.b16 %v502
    %v646 = vunpack.c.l.b16 %v503
    %v647 = vunpack.c.h.b16 %v503
    %v648 = vpack.c.b16 %v558, %v552
    %v649 = vpack.c.b16 %v559, %v553
    %v650 = vpack.c.b16 %v560, %v554
    %v651 = vpack.c.b16 %v561, %v555
    %v652 = vpack.c.b16 %v562, %v556
    %v653 = vpack.c.b16 %v563, %v557
    %v654 = vpack.c.b16 %v570, %v564
    %v655 = vpack.c.b16 %v571, %v565
    %v656 = vpack.c.b16 %v572, %v566
    %v657 = vpack.c.b16 %v573, %v567
    %v658 = vpack.c.b16 %v574, %v568
    %v659 = vpack.c.b16 %v575, %v569
    %v660 = vpack.c.b16 %v582, %v576
    %v661 = vpack.c.b16 %v583, %v577
    %v662 = vpack.c.b16 %v584, %v578
    %v663 = vpack.c.b16 %v585, %v579
    %v664 = vpack.c.b16 %v586, %v580
    %v665 = vpack.c.b16 %v587, %v581
    %v666 = vpack.c.b16 %v594, %v588
    %v667 = vpack.c.b16 %v595, %v589
    %v668 = vpack.c.b16 %v596, %v590
    %v669 = vpack.c.b16 %v597, %v591
    %v670 = vpack.c.b16 %v598, %v592
    %v671 = vpack.c.b16 %v599, %v593
    %v672 = vpack.c.b16 %v606, %v600
    %v673 = vpack.c.b16 %v607, %v601
    %v674 = vpack.c.b16 %v608, %v602
    %v675 = vpack.c.b16 %v609, %v603
    %v676 = vpack.c.b16 %v610, %v604
    %v677 = vpack.c.b16 %v611, %v605
    %v678 = vpack.c.b16 %v618, %v612
    %v679 = vpack.c.b16 %v619, %v613
    %v680 = vpack.c.b16 %v620, %v614
    %v681 = vpack.c.b16 %v621, %v615
    %v682 = vpack.c.b16 %v622, %v616
    %v683 = vpack.c.b16 %v623, %v617
    %v684 = vpack.c.b16 %v630, %v624
    %v685 = vpack.c.b16 %v631, %v625
    %v686 = vpack.c.b16 %v632, %v626
    %v687 = vpack.c.b16 %v633, %v627
    %v688 = vpack.c.b16 %v634, %v628
    %v689 = vpack.c.b16 %v635, %v629
    %v690 = vpack.c.b16 %v642, %v636
    %v691 = vpack.c.b16 %v643, %v637
    %v692 = vpack.c.b16 %v644, %v638
    %v693 = vpack.c.b16 %v645, %v639
    %v694 = vpack.c.b16 %v646, %v640
    %v695 = vpack.c.b16 %v647, %v641
    %744 = vmatprep.subr.bf16.mxu0 %v649
    %745 = vmatpush1.bf16.msra.mxu0 %v648
    %746 = vmatprep.subr.bf16.mxu0 %v655
    %747 = vmatpush1.bf16.msra.mxu0 %v654
    %748 = vmatprep.subr.bf16.mxu0 %v661
    %749 = vmatpush1.bf16.msra.mxu0 %v660
    %750 = vmatprep.subr.bf16.mxu0 %v667
    %751 = vmatpush1.bf16.msra.mxu0 %v666
    %752 = vmatprep.subr.bf16.mxu0 %v673
    %753 = vmatpush1.bf16.msra.mxu0 %v672
    %754 = vmatprep.subr.bf16.mxu0 %v679
    %755 = vmatpush1.bf16.msra.mxu0 %v678
    %756 = vmatprep.subr.bf16.mxu0 %v685
    %757 = vmatpush1.bf16.msra.mxu0 %v684
    %758 = vmatprep.subr.bf16.mxu0 %v691
    %759 = vmatpush1.bf16.msra.mxu0 %v690
    %760 = vmatprep.subr.bf16.mxu0 0
    %761 = vmatpush1.bf16.msra.mxu0 0
    %762 = vmatprep.subr.bf16.mxu0 0
    %763 = vmatpush1.bf16.msra.mxu0 0
    %764 = vmatprep.subr.bf16.mxu0 0
    %765 = vmatpush1.bf16.msra.mxu0 0
    %766 = vmatprep.subr.bf16.mxu0 0
    %767 = vmatpush1.bf16.msra.mxu0 0
    %768 = vmatprep.subr.bf16.mxu0 0
    %769 = vmatpush1.bf16.msra.mxu0 0
    %770 = vmatprep.subr.bf16.mxu0 0
    %771 = vmatpush1.bf16.msra.mxu0 0
    %772 = vmatprep.subr.bf16.mxu0 0
    %773 = vmatpush1.bf16.msra.mxu0 0
    %774 = vmatprep.subr.bf16.mxu0 0
    %775 = vmatpush1.bf16.msra.mxu0 0
    %776 = vmatprep.mubr.bf16.mxu0 0
    %777 = vmatmul.mubr.bf16.gmra.mrb[0].mxu0 1065369472
    %v778 = vpop.f32.mrb[0].mxu0
    %v779 = vadd.f32 0.0, %v778
    %v780 = vpop.f32.mrb[0].mxu0
    %v781 = vadd.f32 0.0, %v780
    %v782 = vpop.f32.mrb[0].mxu0
    %v783 = vpop.f32.mrb[0].mxu0
    %784 = vdwg.mxu0
    %785 = vmatprep.subr.bf16.mxu0 %v651
    %786 = vmatpush1.bf16.msra.mxu0 %v650
    %787 = vmatprep.subr.bf16.mxu0 %v657
    %788 = vmatpush1.bf16.msra.mxu0 %v656
    %789 = vmatprep.subr.bf16.mxu0 %v663
    %790 = vmatpush1.bf16.msra.mxu0 %v662
    %791 = vmatprep.subr.bf16.mxu0 %v669
    %792 = vmatpush1.bf16.msra.mxu0 %v668
    %793 = vmatprep.subr.bf16.mxu0 %v675
    %794 = vmatpush1.bf16.msra.mxu0 %v674
    %795 = vmatprep.subr.bf16.mxu0 %v681
    %796 = vmatpush1.bf16.msra.mxu0 %v680
    %797 = vmatprep.subr.bf16.mxu0 %v687
    %798 = vmatpush1.bf16.msra.mxu0 %v686
    %799 = vmatprep.subr.bf16.mxu0 %v693
    %800 = vmatpush1.bf16.msra.mxu0 %v692
    %801 = vmatprep.subr.bf16.mxu0 0
    %802 = vmatpush1.bf16.msra.mxu0 0
    %803 = vmatprep.subr.bf16.mxu0 0
    %804 = vmatpush1.bf16.msra.mxu0 0
    %805 = vmatprep.subr.bf16.mxu0 0
    %806 = vmatpush1.bf16.msra.mxu0 0
    %807 = vmatprep.subr.bf16.mxu0 0
    %808 = vmatpush1.bf16.msra.mxu0 0
    %809 = vmatprep.subr.bf16.mxu0 0
    %810 = vmatpush1.bf16.msra.mxu0 0
    %811 = vmatprep.subr.bf16.mxu0 0
    %812 = vmatpush1.bf16.msra.mxu0 0
    %813 = vmatprep.subr.bf16.mxu0 0
    %814 = vmatpush1.bf16.msra.mxu0 0
    %815 = vmatprep.subr.bf16.mxu0 0
    %816 = vmatpush1.bf16.msra.mxu0 0
    %817 = vmatprep.mubr.bf16.mxu0 0
    %818 = vmatmul.mubr.bf16.gmra.mrb[0].mxu0 1065369472
    %v819 = vpop.f32.mrb[0].mxu0
    %v820 = vadd.f32 0.0, %v819
    %v821 = vpop.f32.mrb[0].mxu0
    %v822 = vadd.f32 0.0, %v821
    %v823 = vpop.f32.mrb[0].mxu0
    %v824 = vpop.f32.mrb[0].mxu0
    %825 = vdwg.mxu0
    %826 = vmatprep.subr.bf16.mxu0 %v653
    %827 = vmatpush1.bf16.msra.mxu0 %v652
    %828 = vmatprep.subr.bf16.mxu0 %v659
    %829 = vmatpush1.bf16.msra.mxu0 %v658
    %830 = vmatprep.subr.bf16.mxu0 %v665
    %831 = vmatpush1.bf16.msra.mxu0 %v664
    %832 = vmatprep.subr.bf16.mxu0 %v671
    %833 = vmatpush1.bf16.msra.mxu0 %v670
    %834 = vmatprep.subr.bf16.mxu0 %v677
    %835 = vmatpush1.bf16.msra.mxu0 %v676
    %836 = vmatprep.subr.bf16.mxu0 %v683
    %837 = vmatpush1.bf16.msra.mxu0 %v682
    %838 = vmatprep.subr.bf16.mxu0 %v689
    %839 = vmatpush1.bf16.msra.mxu0 %v688
    %840 = vmatprep.subr.bf16.mxu0 %v695
    %841 = vmatpush1.bf16.msra.mxu0 %v694
    %842 = vmatprep.subr.bf16.mxu0 0
    %843 = vmatpush1.bf16.msra.mxu0 0
    %844 = vmatprep.subr.bf16.mxu0 0
    %845 = vmatpush1.bf16.msra.mxu0 0
    %846 = vmatprep.subr.bf16.mxu0 0
    %847 = vmatpush1.bf16.msra.mxu0 0
    %848 = vmatprep.subr.bf16.mxu0 0
    %849 = vmatpush1.bf16.msra.mxu0 0
    %850 = vmatprep.subr.bf16.mxu0 0
    %851 = vmatpush1.bf16.msra.mxu0 0
    %852 = vmatprep.subr.bf16.mxu0 0
    %853 = vmatpush1.bf16.msra.mxu0 0
    %854 = vmatprep.subr.bf16.mxu0 0
    %855 = vmatpush1.bf16.msra.mxu0 0
    %856 = vmatprep.subr.bf16.mxu0 0
    %857 = vmatpush1.bf16.msra.mxu0 0
    %858 = vmatprep.mubr.bf16.mxu0 0
    %859 = vmatmul.mubr.bf16.gmra.mrb[0].mxu0 1065369472
    %v860 = vpop.f32.mrb[0].mxu0
    %v861 = vadd.f32 0.0, %v860
    %v862 = vpop.f32.mrb[0].mxu0
    %v863 = vadd.f32 0.0, %v862
    %v864 = vpop.f32.mrb[0].mxu0
    %v865 = vpop.f32.mrb[0].mxu0
    %866 = vdwg.mxu0
    %v867 = vmax.f32 %v779, 1e-24
    %v868 = vmax.f32 %v781, 1e-24
    %v869 = vmax.f32 %v820, 1e-24
    %v870 = vmax.f32 %v822, 1e-24
    %v871 = vmax.f32 %v861, 1e-24
    %v872 = vmax.f32 %v863, 1e-24
    %v873 = vrsqrt.pop %v867
    %v874 = vrsqrt.pop %v868
    %v875 = vrsqrt.pop %v869
    %v876 = vrsqrt.pop %v870
    %v877 = vrsqrt.pop %v871
    %v878 = vrsqrt.pop %v872
    %v879 = vmul.f32 %v873, 64.0
    %v880 = vmul.f32 %v874, 64.0
    %v881 = vmul.f32 %v875, 64.0
    %v882 = vmul.f32 %v876, 64.0
    %v883 = vmul.f32 %v877, 64.0
    %v884 = vmul.f32 %v878, 64.0
    %v885 = vld [vmem:[%s2] sm:$0xff]
    %v886 = vld [vmem:[%s2 + $0x8] sm:$0xff]
    %v887 = vlaneseq
    %v888 = vand.u32 %v887, 127
    %v889 = vadd.s32 %v888, 128
    %v890 = vadd.s32 %v888, 256
    %v891 = vadd.s32 %v888, 384
    %v892 = vadd.s32 %v888, 512
    %v893 = vadd.s32 %v888, 640
    %s894 = smul.u32 0, 768
    %v895 = vstv %s894
    %v896 = vadd.s32 %v888, %v895
    %v897 = vadd.s32 %v889, %v895
    %v898 = vadd.s32 %v890, %v895
    %v899 = vadd.s32 %v891, %v895
    %v900 = vadd.s32 %v892, %v895
    %v901 = vadd.s32 %v893, %v895
    %902 = vset.pattern.permute.xlu0 0
    %903 = vperm.xlu0 %902, %v885
    %v904 = vpop.permute.xlu0 %903
    %905 = vset.pattern.permute.xlu0 0
    %906 = vperm.xlu0 %905, %v886
    %v907 = vpop.permute.xlu0 %906
    %vm908 = vcmp.eq.s32.totalorder %v896, %v904
    %vm909 = vcmp.eq.s32.totalorder %v897, %v904
    %vm910 = vcmp.eq.s32.totalorder %v898, %v904
    %vm911 = vcmp.eq.s32.totalorder %v899, %v904
    %vm912 = vcmp.eq.s32.totalorder %v900, %v904
    %vm913 = vcmp.eq.s32.totalorder %v901, %v904
    %vm914 = vcmp.eq.s32.totalorder %v896, %v907
    %vm915 = vcmp.eq.s32.totalorder %v897, %v907
    %vm916 = vcmp.eq.s32.totalorder %v898, %v907
    %vm917 = vcmp.eq.s32.totalorder %v899, %v907
    %vm918 = vcmp.eq.s32.totalorder %v900, %v907
    %vm919 = vcmp.eq.s32.totalorder %v901, %v907
    %vm920 = vcmp.ne.s32.totalorder %v885, 4294967295
    %vm921 = vcmp.ne.s32.totalorder %v886, 4294967295
    %v922 = vsel %vm920, 1, 0
    %v923 = vsel %vm921, 1, 0
    %924 = vset.pattern.permute.xlu0 0
    %925 = vperm.xlu0 %924, %v922
    %v926 = vpop.permute.xlu0 %925
    %927 = vset.pattern.permute.xlu0 0
    %928 = vperm.xlu0 %927, %v923
    %v929 = vpop.permute.xlu0 %928
    %vm930 = vcmp.eq.s32.totalorder %v926, 1
    %vm931 = vcmp.eq.s32.totalorder %v929, 1
    %vm932 = vmand %vm908, %vm930
    %vm933 = vmand %vm909, %vm930
    %vm934 = vmand %vm910, %vm930
    %vm935 = vmand %vm911, %vm930
    %vm936 = vmand %vm912, %vm930
    %vm937 = vmand %vm913, %vm930
    %vm938 = vmand %vm914, %vm931
    %vm939 = vmand %vm915, %vm931
    %vm940 = vmand %vm916, %vm931
    %vm941 = vmand %vm917, %vm931
    %vm942 = vmand %vm918, %vm931
    %vm943 = vmand %vm919, %vm931
    %v944 = vlaneseq
    %v945 = vshrl.u32 %v944, 7
    %v946 = vsub.s32 0, %v945
    %v947 = vrot.slane %v879, %v946
    %v948 = vlaneseq
    %v949 = vshrl.u32 %v948, 7
    %v950 = vsub.s32 0, %v949
    %v951 = vrot.slane %v880, %v950
    %v952 = vlaneseq
    %v953 = vshrl.u32 %v952, 7
    %v954 = vsub.s32 0, %v953
    %v955 = vrot.slane %v881, %v954
    %v956 = vlaneseq
    %v957 = vshrl.u32 %v956, 7
    %v958 = vsub.s32 0, %v957
    %v959 = vrot.slane %v882, %v958
    %v960 = vlaneseq
    %v961 = vshrl.u32 %v960, 7
    %v962 = vsub.s32 0, %v961
    %v963 = vrot.slane %v883, %v962
    %v964 = vlaneseq
    %v965 = vshrl.u32 %v964, 7
    %v966 = vsub.s32 0, %v965
    %v967 = vrot.slane %v884, %v966
    %v968 = vmul.f32 %v362, %v947
    %v969 = vmul.f32 %v364, %v951
    %v970 = vmul.f32 %v405, %v955
    %v971 = vmul.f32 %v407, %v959
    %v972 = vmul.f32 %v448, %v963
    %v973 = vmul.f32 %v450, %v967
    %v974 = vmul.f32 %v366, %v947
    %v975 = vmul.f32 %v368, %v951
    %v976 = vmul.f32 %v409, %v955
    %v977 = vmul.f32 %v411, %v959
    %v978 = vmul.f32 %v452, %v963
    %v979 = vmul.f32 %v454, %v967
    %v980 = vsel %vm932, 1, 0
    %v981 = vsel %vm933, 1, 0
    %v982 = vsel %vm934, 1, 0
    %v983 = vsel %vm935, 1, 0
    %v984 = vsel %vm936, 1, 0
    %v985 = vsel %vm937, 1, 0
    %v986 = vsel %vm938, 1, 0
    %v987 = vsel %vm939, 1, 0
    %v988 = vsel %vm940, 1, 0
    %v989 = vsel %vm941, 1, 0
    %v990 = vsel %vm942, 1, 0
    %v991 = vsel %vm943, 1, 0
    %v992 = vcvt.s32.f32 %v980
    %v993 = vcvt.s32.f32 %v981
    %v994 = vcvt.s32.f32 %v982
    %v995 = vcvt.s32.f32 %v983
    %v996 = vcvt.s32.f32 %v984
    %v997 = vcvt.s32.f32 %v985
    %v998 = vcvt.s32.f32 %v986
    %v999 = vcvt.s32.f32 %v987
    %v1000 = vcvt.s32.f32 %v988
    %v1001 = vcvt.s32.f32 %v989
    %v1002 = vcvt.s32.f32 %v990
    %v1003 = vcvt.s32.f32 %v991
    %v1004 = vmul.f32 %v992, 25.6
    %v1005 = vmul.f32 %v993, 25.6
    %v1006 = vmul.f32 %v994, 25.6
    %v1007 = vmul.f32 %v995, 25.6
    %v1008 = vmul.f32 %v996, 25.6
    %v1009 = vmul.f32 %v997, 25.6
    %v1010 = vmul.f32 %v998, 25.6
    %v1011 = vmul.f32 %v999, 25.6
    %v1012 = vmul.f32 %v1000, 25.6
    %v1013 = vmul.f32 %v1001, 25.6
    %v1014 = vmul.f32 %v1002, 25.6
    %v1015 = vmul.f32 %v1003, 25.6
    %v1016 = vsub.f32 %v968, %v1004
    %v1017 = vsub.f32 %v969, %v1005
    %v1018 = vsub.f32 %v970, %v1006
    %v1019 = vsub.f32 %v971, %v1007
    %v1020 = vsub.f32 %v972, %v1008
    %v1021 = vsub.f32 %v973, %v1009
    %v1022 = vsub.f32 %v974, %v1010
    %v1023 = vsub.f32 %v975, %v1011
    %v1024 = vsub.f32 %v976, %v1012
    %v1025 = vsub.f32 %v977, %v1013
    %v1026 = vsub.f32 %v978, %v1014
    %v1027 = vsub.f32 %v979, %v1015
    %1028 = vst [vmem:[#allocation5] sm:$0xff] %v1016
    %1029 = vst [vmem:[#allocation5 + $0x8] sm:$0xff] %v1017
    %1030 = vst [vmem:[#allocation5 + $0x10] sm:$0xff] %v1018
    %1031 = vst [vmem:[#allocation5 + $0x18] sm:$0xff] %v1019
    %1032 = vst [vmem:[#allocation5 + $0x20] sm:$0xff] %v1020
    %1033 = vst [vmem:[#allocation5 + $0x28] sm:$0xff] %v1021
    %1034 = vst [vmem:[#allocation5 + $0x30] sm:$0xff] %v1022
    %1035 = vst [vmem:[#allocation5 + $0x38] sm:$0xff] %v1023
    %1036 = vst [vmem:[#allocation5 + $0x40] sm:$0xff] %v1024
    %1037 = vst [vmem:[#allocation5 + $0x48] sm:$0xff] %v1025
    %1038 = vst [vmem:[#allocation5 + $0x50] sm:$0xff] %v1026
    %1039 = vst [vmem:[#allocation5 + $0x58] sm:$0xff] %v1027
    // Predicated region
    $region18: #{tpu_custom_call.1} parent=1 // pred_check
      _
    $region19: #{tpu_custom_call.1} parent=1 // pred_check_branch
      %1041 = sbr.rel (0) target = $region21
    $region20: #{tpu_custom_call.1} parent=1 // pred_region
      %s1043 = ssub.s32 1536, 1280
      %1044 = vsyncadd [#allocation4], %s1043
      %s1045 = sshll.u32 [#allocation5], 4
      %s1046 = int_to_ptr.vmem [resolvable:$true] %s1045
      %1051 = dma.vmem_to_hbm [thread:$0]  %s1046, 1280, %s3, [#allocation4], 768, 640, 40
    $region21: #{tpu_custom_call.1} parent=1 // pred_fallthru
      _
    // Predicated region
    $region22: #{tpu_custom_call.1} parent=1 // pred_check
      _
    $region23: #{tpu_custom_call.1} parent=1 // pred_check_branch
      %1053 = sbr.rel (0) target = $region25
    $region24: #{tpu_custom_call.1} parent=1 // pred_region
      %1054 = dma.done [#allocation4], 1536
    $region25: #{tpu_custom_call.1} parent=1 // pred_fallthru
      _
    %1055 = vsyncpa [#allocation3], 1
    %1056 = vsyncpa [#allocation4], 1

// kernel: tpu_custom_call.1
$region0: #{tpu_custom_call.1}
  #allocation0 [shape = 'u32[]', space=smem, size = 0x4, offset = 0x4, fixed_abs, tag = 'smem constant byte address 0x4 - core index']
  #allocation1 [shape = 'u32[144,128]{1,0:T(1,128)}', space=vmem, size = 0x12000, scoped, tag = 'internal scratch']
  %s0 = inlined_call_operand.vmem [shape: bf16[16,128], index: 0, kind: input, shape index: {}]
  %s1 = inlined_call_operand.hbm [shape: bf16[128,640], index: 1, kind: input, shape index: {}]
  %s2 = inlined_call_operand.vmem [shape: s32[16,1], index: 2, kind: input, shape index: {}]
  %s3 = inlined_call_operand.hbm [shape: f32[16,640], index: 3, kind: output, shape index: {}]
  %s4 = sld [smem:[#allocation0]]
  $region26: #{tpu_custom_call.1} parent=0
    _
  %s6 = ssub.s32 1, %s4
  %s7 = scalar_select 0, %s6, %s4
  $region1: #{tpu_custom_call.1} parent=0
    #allocation2 [shape = 'u8[196608]{0}', space=vmem, size = 0x30000, scoped, tag = 'input window, operand 1, single buffered']
    #allocation3 [shape = 's32[1]{0}', space=sflag, size = 0x4, scoped, tag = 'scoped memory for tpu_custom_call.1']
    #allocation4 [shape = 's32[1]{0}', space=sflag, size = 0x4, scoped, tag = 'scoped memory for tpu_custom_call.1']
    #allocation5 [shape = 'u8[49152]{0}', space=vmem, size = 0xc000, scoped, tag = 'output window, operand 0, single buffered']
    %8 = vsyncpa [#allocation3], 0
    %9 = vsyncpa [#allocation4], 0
    // Predicated region
    $region2: #{tpu_custom_call.1} parent=1 // pred_check
      _
    $region3: #{tpu_custom_call.1} parent=1 // pred_check_branch
      %11 = sbr.rel (0) target = $region5
    $region4: #{tpu_custom_call.1} parent=1 // pred_region
      _
    $region5: #{tpu_custom_call.1} parent=1 // pred_fallthru
      _
    // Predicated region
    $region6: #{tpu_custom_call.1} parent=1 // pred_check
      _
    $region7: #{tpu_custom_call.1} parent=1 // pred_check_branch
      %13 = sbr.rel (0) target = $region9
    $region8: #{tpu_custom_call.1} parent=1 // pred_region
      %s15 = ssub.s32 6144, 5120
      %16 = vsyncadd [#allocation3], %s15
      %s17 = sshll.u32 [#allocation2], 4
      %s18 = int_to_ptr.vmem [resolvable:$true] %s17
      %23 = dma.hbm_to_vmem [thread:$0]  %s1, 5120, %s18, [#allocation3], 320, 384, 20
    $region9: #{tpu_custom_call.1} parent=1 // pred_fallthru
      _
    // Predicated region
    $region10: #{tpu_custom_call.1} parent=1 // pred_check
      _
    $region11: #{tpu_custom_call.1} parent=1 // pred_check_branch
      %25 = sbr.rel (0) target = $region13
    $region12: #{tpu_custom_call.1} parent=1 // pred_region
      _
    $region13: #{tpu_custom_call.1} parent=1 // pred_fallthru
      _
    // Predicated region
    $region14: #{tpu_custom_call.1} parent=1 // pred_check
      _
    $region15: #{tpu_custom_call.1} parent=1 // pred_check_branch
      %27 = sbr.rel (0) target = $region17
    $region16: #{tpu_custom_call.1} parent=1 // pred_region
      %28 = dma.done [#allocation3], 6144
    $region17: #{tpu_custom_call.1} parent=1 // pred_fallthru
      _
    %v31 = vld [vmem:[%s0] sm:$0xf]
    %v32 = vld [vmem:[%s0 + $0x4] sm:$0xf]
    %v33 = vld [vmem:[#allocation2] sm:$0xff]
    %v34 = vld [vmem:[#allocation2 + $0x8] sm:$0xff]
    %v35 = vld [vmem:[#allocation2 + $0x10] sm:$0xff]
    %v36 = vld [vmem:[#allocation2 + $0x18] sm:$0xff]
    %v37 = vld [vmem:[#allocation2 + $0x20] sm:$0xff]
    %v38 = vld [vmem:[#allocation2 + $0x28] sm:$0xff]
    %v39 = vld [vmem:[#allocation2 + $0x30] sm:$0xff]
    %v40 = vld [vmem:[#allocation2 + $0x38] sm:$0xff]
    %v41 = vld [vmem:[#allocation2 + $0x40] sm:$0xff]
    %v42 = vld [vmem:[#allocation2 + $0x48] sm:$0xff]
    %v43 = vld [vmem:[#allocation2 + $0x50] sm:$0xff]
    %v44 = vld [vmem:[#allocation2 + $0x58] sm:$0xff]
    %v45 = vld [vmem:[#allocation2 + $0x60] sm:$0xff]
    %v46 = vld [vmem:[#allocation2 + $0x68] sm:$0xff]
    %v47 = vld [vmem:[#allocation2 + $0x70] sm:$0xff]
    %v48 = vld [vmem:[#allocation2 + $0x78] sm:$0xff]
    %v49 = vld [vmem:[#allocation2 + $0x80] sm:$0xff]
    %v50 = vld [vmem:[#allocation2 + $0x88] sm:$0xff]
    %v51 = vld [vmem:[#allocation2 + $0x90] sm:$0xff]
    %v52 = vld [vmem:[#allocation2 + $0x98] sm:$0xff]
    %v53 = vld [vmem:[#allocation2 + $0xa0] sm:$0xff]
    %v54 = vld [vmem:[#allocation2 + $0xa8] sm:$0xff]
    %v55 = vld [vmem:[#allocation2 + $0xb0] sm:$0xff]
    %v56 = vld [vmem:[#allocation2 + $0xb8] sm:$0xff]
    %v57 = vld [vmem:[#allocation2 + $0xc0] sm:$0xff]
    %v58 = vld [vmem:[#allocation2 + $0xc8] sm:$0xff]
    %v59 = vld [vmem:[#allocation2 + $0xd0] sm:$0xff]
    %v60 = vld [vmem:[#allocation2 + $0xd8] sm:$0xff]
    %v61 = vld [vmem:[#allocation2 + $0xe0] sm:$0xff]
    %v62 = vld [vmem:[#allocation2 + $0xe8] sm:$0xff]
    %v63 = vld [vmem:[#allocation2 + $0xf0] sm:$0xff]
    %v64 = vld [vmem:[#allocation2 + $0xf8] sm:$0xff]
    %v65 = vld [vmem:[#allocation2 + $0x100] sm:$0xff]
    %v66 = vld [vmem:[#allocation2 + $0x108] sm:$0xff]
    %v67 = vld [vmem:[#allocation2 + $0x110] sm:$0xff]
    %v68 = vld [vmem:[#allocation2 + $0x118] sm:$0xff]
    %v69 = vld [vmem:[#allocation2 + $0x120] sm:$0xff]
    %v70 = vld [vmem:[#allocation2 + $0x128] sm:$0xff]
    %v71 = vld [vmem:[#allocation2 + $0x130] sm:$0xff]
    %v72 = vld [vmem:[#allocation2 + $0x138] sm:$0xff]
    %v73 = vld [vmem:[#allocation2 + $0x140] sm:$0xff]
    %v74 = vld [vmem:[#allocation2 + $0x148] sm:$0xff]
    %v75 = vld [vmem:[#allocation2 + $0x150] sm:$0xff]
    %v76 = vld [vmem:[#allocation2 + $0x158] sm:$0xff]
    %v77 = vld [vmem:[#allocation2 + $0x160] sm:$0xff]
    %v78 = vld [vmem:[#allocation2 + $0x168] sm:$0xff]
    %v79 = vld [vmem:[#allocation2 + $0x170] sm:$0xff]
    %v80 = vld [vmem:[#allocation2 + $0x178] sm:$0xff]
    %v83 = vunpack.c.l.b16 %v31
    %v84 = vunpack.c.l.b16 %v32
    %v85 = vpack.c.b16 %v84, %v83
    %v135 = vunpack.c.l.b16 %v33
    %v136 = vunpack.c.h.b16 %v33
    %v137 = vunpack.c.l.b16 %v34
    %v138 = vunpack.c.h.b16 %v34
    %v139 = vunpack.c.l.b16 %v35
    %v140 = vunpack.c.h.b16 %v35
    %v141 = vunpack.c.l.b16 %v36
    %v142 = vunpack.c.h.b16 %v36
    %v143 = vunpack.c.l.b16 %v37
    %v144 = vunpack.c.h.b16 %v37
    %v145 = vunpack.c.l.b16 %v38
    %v146 = vunpack.c.h.b16 %v38
    %v147 = vunpack.c.l.b16 %v39
    %v148 = vunpack.c.h.b16 %v39
    %v149 = vunpack.c.l.b16 %v40
    %v150 = vunpack.c.h.b16 %v40
    %v151 = vunpack.c.l.b16 %v41
    %v152 = vunpack.c.h.b16 %v41
    %v153 = vunpack.c.l.b16 %v42
    %v154 = vunpack.c.h.b16 %v42
    %v155 = vunpack.c.l.b16 %v43
    %v156 = vunpack.c.h.b16 %v43
    %v157 = vunpack.c.l.b16 %v44
    %v158 = vunpack.c.h.b16 %v44
    %v159 = vunpack.c.l.b16 %v45
    %v160 = vunpack.c.h.b16 %v45
    %v161 = vunpack.c.l.b16 %v46
    %v162 = vunpack.c.h.b16 %v46
    %v163 = vunpack.c.l.b16 %v47
    %v164 = vunpack.c.h.b16 %v47
    %v165 = vunpack.c.l.b16 %v48
    %v166 = vunpack.c.h.b16 %v48
    %v167 = vunpack.c.l.b16 %v49
    %v168 = vunpack.c.h.b16 %v49
    %v169 = vunpack.c.l.b16 %v50
    %v170 = vunpack.c.h.b16 %v50
    %v171 = vunpack.c.l.b16 %v51
    %v172 = vunpack.c.h.b16 %v51
    %v173 = vunpack.c.l.b16 %v52
    %v174 = vunpack.c.h.b16 %v52
    %v175 = vunpack.c.l.b16 %v53
    %v176 = vunpack.c.h.b16 %v53
    %v177 = vunpack.c.l.b16 %v54
    %v178 = vunpack.c.h.b16 %v54
    %v179 = vunpack.c.l.b16 %v55
    %v180 = vunpack.c.h.b16 %v55
    %v181 = vunpack.c.l.b16 %v56
    %v182 = vunpack.c.h.b16 %v56
    %v183 = vunpack.c.l.b16 %v57
    %v184 = vunpack.c.h.b16 %v57
    %v185 = vunpack.c.l.b16 %v58
    %v186 = vunpack.c.h.b16 %v58
    %v187 = vunpack.c.l.b16 %v59
    %v188 = vunpack.c.h.b16 %v59
    %v189 = vunpack.c.l.b16 %v60
    %v190 = vunpack.c.h.b16 %v60
    %v191 = vunpack.c.l.b16 %v61
    %v192 = vunpack.c.h.b16 %v61
    %v193 = vunpack.c.l.b16 %v62
    %v194 = vunpack.c.h.b16 %v62
    %v195 = vunpack.c.l.b16 %v63
    %v196 = vunpack.c.h.b16 %v63
    %v197 = vunpack.c.l.b16 %v64
    %v198 = vunpack.c.h.b16 %v64
    %v199 = vunpack.c.l.b16 %v65
    %v200 = vunpack.c.h.b16 %v65
    %v201 = vunpack.c.l.b16 %v66
    %v202 = vunpack.c.h.b16 %v66
    %v203 = vunpack.c.l.b16 %v67
    %v204 = vunpack.c.h.b16 %v67
    %v205 = vunpack.c.l.b16 %v68
    %v206 = vunpack.c.h.b16 %v68
    %v207 = vunpack.c.l.b16 %v69
    %v208 = vunpack.c.h.b16 %v69
    %v209 = vunpack.c.l.b16 %v70
    %v210 = vunpack.c.h.b16 %v70
    %v211 = vunpack.c.l.b16 %v71
    %v212 = vunpack.c.h.b16 %v71
    %v213 = vunpack.c.l.b16 %v72
    %v214 = vunpack.c.h.b16 %v72
    %v215 = vunpack.c.l.b16 %v73
    %v216 = vunpack.c.h.b16 %v73
    %v217 = vunpack.c.l.b16 %v74
    %v218 = vunpack.c.h.b16 %v74
    %v219 = vunpack.c.l.b16 %v75
    %v220 = vunpack.c.h.b16 %v75
    %v221 = vunpack.c.l.b16 %v76
    %v222 = vunpack.c.h.b16 %v76
    %v223 = vunpack.c.l.b16 %v77
    %v224 = vunpack.c.h.b16 %v77
    %v225 = vunpack.c.l.b16 %v78
    %v226 = vunpack.c.h.b16 %v78
    %v227 = vunpack.c.l.b16 %v79
    %v228 = vunpack.c.h.b16 %v79
    %v229 = vunpack.c.l.b16 %v80
    %v230 = vunpack.c.h.b16 %v80
    %v231 = vpack.c.b16 %v141, %v135
    %v232 = vpack.c.b16 %v142, %v136
    %v233 = vpack.c.b16 %v143, %v137
    %v234 = vpack.c.b16 %v144, %v138
    %v235 = vpack.c.b16 %v145, %v139
    %v236 = vpack.c.b16 %v146, %v140
    %v237 = vpack.c.b16 %v153, %v147
    %v238 = vpack.c.b16 %v154, %v148
    %v239 = vpack.c.b16 %v155, %v149
    %v240 = vpack.c.b16 %v156, %v150
    %v241 = vpack.c.b16 %v157, %v151
    %v242 = vpack.c.b16 %v158, %v152
    %v243 = vpack.c.b16 %v165, %v159
    %v244 = vpack.c.b16 %v166, %v160
    %v245 = vpack.c.b16 %v167, %v161
    %v246 = vpack.c.b16 %v168, %v162
    %v247 = vpack.c.b16 %v169, %v163
    %v248 = vpack.c.b16 %v170, %v164
    %v249 = vpack.c.b16 %v177, %v171
    %v250 = vpack.c.b16 %v178, %v172
    %v251 = vpack.c.b16 %v179, %v173
    %v252 = vpack.c.b16 %v180, %v174
    %v253 = vpack.c.b16 %v181, %v175
    %v254 = vpack.c.b16 %v182, %v176
    %v255 = vpack.c.b16 %v189, %v183
    %v256 = vpack.c.b16 %v190, %v184
    %v257 = vpack.c.b16 %v191, %v185
    %v258 = vpack.c.b16 %v192, %v186
    %v259 = vpack.c.b16 %v193, %v187
    %v260 = vpack.c.b16 %v194, %v188
    %v261 = vpack.c.b16 %v201, %v195
    %v262 = vpack.c.b16 %v202, %v196
    %v263 = vpack.c.b16 %v203, %v197
    %v264 = vpack.c.b16 %v204, %v198
    %v265 = vpack.c.b16 %v205, %v199
    %v266 = vpack.c.b16 %v206, %v200
    %v267 = vpack.c.b16 %v213, %v207
    %v268 = vpack.c.b16 %v214, %v208
    %v269 = vpack.c.b16 %v215, %v209
    %v270 = vpack.c.b16 %v216, %v210
    %v271 = vpack.c.b16 %v217, %v211
    %v272 = vpack.c.b16 %v218, %v212
    %v273 = vpack.c.b16 %v225, %v219
    %v274 = vpack.c.b16 %v226, %v220
    %v275 = vpack.c.b16 %v227, %v221
    %v276 = vpack.c.b16 %v228, %v222
    %v277 = vpack.c.b16 %v229, %v223
    %v278 = vpack.c.b16 %v230, %v224
    %327 = vmatprep.subr.bf16.mxu0 %v232
    %328 = vmatpush1.bf16.msra.mxu0 %v231
    %329 = vmatprep.subr.bf16.mxu0 %v238
    %330 = vmatpush1.bf16.msra.mxu0 %v237
    %331 = vmatprep.subr.bf16.mxu0 %v244
    %332 = vmatpush1.bf16.msra.mxu0 %v243
    %333 = vmatprep.subr.bf16.mxu0 %v250
    %334 = vmatpush1.bf16.msra.mxu0 %v249
    %335 = vmatprep.subr.bf16.mxu0 %v256
    %336 = vmatpush1.bf16.msra.mxu0 %v255
    %337 = vmatprep.subr.bf16.mxu0 %v262
    %338 = vmatpush1.bf16.msra.mxu0 %v261
    %339 = vmatprep.subr.bf16.mxu0 %v268
    %340 = vmatpush1.bf16.msra.mxu0 %v267
    %341 = vmatprep.subr.bf16.mxu0 %v274
    %342 = vmatpush1.bf16.msra.mxu0 %v273
    %343 = vmatprep.subr.bf16.mxu0 0
    %344 = vmatpush1.bf16.msra.mxu0 0
    %345 = vmatprep.subr.bf16.mxu0 0
    %346 = vmatpush1.bf16.msra.mxu0 0
    %347 = vmatprep.subr.bf16.mxu0 0
    %348 = vmatpush1.bf16.msra.mxu0 0
    %349 = vmatprep.subr.bf16.mxu0 0
    %350 = vmatpush1.bf16.msra.mxu0 0
    %351 = vmatprep.subr.bf16.mxu0 0
    %352 = vmatpush1.bf16.msra.mxu0 0
    %353 = vmatprep.subr.bf16.mxu0 0
    %354 = vmatpush1.bf16.msra.mxu0 0
    %355 = vmatprep.subr.bf16.mxu0 0
    %356 = vmatpush1.bf16.msra.mxu0 0
    %357 = vmatprep.subr.bf16.mxu0 0
    %358 = vmatpush1.bf16.msra.mxu0 0
    %359 = vmatprep.mubr.bf16.mxu0 0
    %360 = vmatmul.mubr.bf16.gmra.mrb[0].mxu0 %v85
    %v361 = vpop.f32.mrb[0].mxu0
    %v362 = vadd.f32 0.0, %v361
    %v363 = vpop.f32.mrb[0].mxu0
    %v364 = vadd.f32 0.0, %v363
    %v365 = vpop.f32.mrb[0].mxu0
    %v366 = vadd.f32 0.0, %v365
    %v367 = vpop.f32.mrb[0].mxu0
    %v368 = vadd.f32 0.0, %v367
    %369 = vdwg.mxu0
    %370 = vmatprep.subr.bf16.mxu0 %v234
    %371 = vmatpush1.bf16.msra.mxu0 %v233
    %372 = vmatprep.subr.bf16.mxu0 %v240
    %373 = vmatpush1.bf16.msra.mxu0 %v239
    %374 = vmatprep.subr.bf16.mxu0 %v246
    %375 = vmatpush1.bf16.msra.mxu0 %v245
    %376 = vmatprep.subr.bf16.mxu0 %v252
    %377 = vmatpush1.bf16.msra.mxu0 %v251
    %378 = vmatprep.subr.bf16.mxu0 %v258
    %379 = vmatpush1.bf16.msra.mxu0 %v257
    %380 = vmatprep.subr.bf16.mxu0 %v264
    %381 = vmatpush1.bf16.msra.mxu0 %v263
    %382 = vmatprep.subr.bf16.mxu0 %v270
    %383 = vmatpush1.bf16.msra.mxu0 %v269
    %384 = vmatprep.subr.bf16.mxu0 %v276
    %385 = vmatpush1.bf16.msra.mxu0 %v275
    %386 = vmatprep.subr.bf16.mxu0 0
    %387 = vmatpush1.bf16.msra.mxu0 0
    %388 = vmatprep.subr.bf16.mxu0 0
    %389 = vmatpush1.bf16.msra.mxu0 0
    %390 = vmatprep.subr.bf16.mxu0 0
    %391 = vmatpush1.bf16.msra.mxu0 0
    %392 = vmatprep.subr.bf16.mxu0 0
    %393 = vmatpush1.bf16.msra.mxu0 0
    %394 = vmatprep.subr.bf16.mxu0 0
    %395 = vmatpush1.bf16.msra.mxu0 0
    %396 = vmatprep.subr.bf16.mxu0 0
    %397 = vmatpush1.bf16.msra.mxu0 0
    %398 = vmatprep.subr.bf16.mxu0 0
    %399 = vmatpush1.bf16.msra.mxu0 0
    %400 = vmatprep.subr.bf16.mxu0 0
    %401 = vmatpush1.bf16.msra.mxu0 0
    %402 = vmatprep.mubr.bf16.mxu0 0
    %403 = vmatmul.mubr.bf16.gmra.mrb[0].mxu0 %v85
    %v404 = vpop.f32.mrb[0].mxu0
    %v405 = vadd.f32 0.0, %v404
    %v406 = vpop.f32.mrb[0].mxu0
    %v407 = vadd.f32 0.0, %v406
    %v408 = vpop.f32.mrb[0].mxu0
    %v409 = vadd.f32 0.0, %v408
    %v410 = vpop.f32.mrb[0].mxu0
    %v411 = vadd.f32 0.0, %v410
    %412 = vdwg.mxu0
    %413 = vmatprep.subr.bf16.mxu0 %v236
    %414 = vmatpush1.bf16.msra.mxu0 %v235
    %415 = vmatprep.subr.bf16.mxu0 %v242
    %416 = vmatpush1.bf16.msra.mxu0 %v241
    %417 = vmatprep.subr.bf16.mxu0 %v248
    %418 = vmatpush1.bf16.msra.mxu0 %v247
    %419 = vmatprep.subr.bf16.mxu0 %v254
    %420 = vmatpush1.bf16.msra.mxu0 %v253
    %421 = vmatprep.subr.bf16.mxu0 %v260
    %422 = vmatpush1.bf16.msra.mxu0 %v259
    %423 = vmatprep.subr.bf16.mxu0 %v266
    %424 = vmatpush1.bf16.msra.mxu0 %v265
    %425 = vmatprep.subr.bf16.mxu0 %v272
    %426 = vmatpush1.bf16.msra.mxu0 %v271
    %427 = vmatprep.subr.bf16.mxu0 %v278
    %428 = vmatpush1.bf16.msra.mxu0 %v277
    %429 = vmatprep.subr.bf16.mxu0 0
    %430 = vmatpush1.bf16.msra.mxu0 0
    %431 = vmatprep.subr.bf16.mxu0 0
    %432 = vmatpush1.bf16.msra.mxu0 0
    %433 = vmatprep.subr.bf16.mxu0 0
    %434 = vmatpush1.bf16.msra.mxu0 0
    %435 = vmatprep.subr.bf16.mxu0 0
    %436 = vmatpush1.bf16.msra.mxu0 0
    %437 = vmatprep.subr.bf16.mxu0 0
    %438 = vmatpush1.bf16.msra.mxu0 0
    %439 = vmatprep.subr.bf16.mxu0 0
    %440 = vmatpush1.bf16.msra.mxu0 0
    %441 = vmatprep.subr.bf16.mxu0 0
    %442 = vmatpush1.bf16.msra.mxu0 0
    %443 = vmatprep.subr.bf16.mxu0 0
    %444 = vmatpush1.bf16.msra.mxu0 0
    %445 = vmatprep.mubr.bf16.mxu0 0
    %446 = vmatmul.mubr.bf16.gmra.mrb[0].mxu0 %v85
    %v447 = vpop.f32.mrb[0].mxu0
    %v448 = vadd.f32 0.0, %v447
    %v449 = vpop.f32.mrb[0].mxu0
    %v450 = vadd.f32 0.0, %v449
    %v451 = vpop.f32.mrb[0].mxu0
    %v452 = vadd.f32 0.0, %v451
    %v453 = vpop.f32.mrb[0].mxu0
    %v454 = vadd.f32 0.0, %v453
    %455 = vdwg.mxu0
    %v456 = vmul.bf16 %v33, %v33
    %v457 = vmul.bf16 %v34, %v34
    %v458 = vmul.bf16 %v35, %v35
    %v459 = vmul.bf16 %v36, %v36
    %v460 = vmul.bf16 %v37, %v37
    %v461 = vmul.bf16 %v38, %v38
    %v462 = vmul.bf16 %v39, %v39
    %v463 = vmul.bf16 %v40, %v40
    %v464 = vmul.bf16 %v41, %v41
    %v465 = vmul.bf16 %v42, %v42
    %v466 = vmul.bf16 %v43, %v43
    %v467 = vmul.bf16 %v44, %v44
    %v468 = vmul.bf16 %v45, %v45
    %v469 = vmul.bf16 %v46, %v46
    %v470 = vmul.bf16 %v47, %v47
    %v471 = vmul.bf16 %v48, %v48
    %v472 = vmul.bf16 %v49, %v49
    %v473 = vmul.bf16 %v50, %v50
    %v474 = vmul.bf16 %v51, %v51
    %v475 = vmul.bf16 %v52, %v52
    %v476 = vmul.bf16 %v53, %v53
    %v477 = vmul.bf16 %v54, %v54
    %v478 = vmul.bf16 %v55, %v55
    %v479 = vmul.bf16 %v56, %v56
    %v480 = vmul.bf16 %v57, %v57
    %v481 = vmul.bf16 %v58, %v58
    %v482 = vmul.bf16 %v59, %v59
    %v483 = vmul.bf16 %v60, %v60
    %v484 = vmul.bf16 %v61, %v61
    %v485 = vmul.bf16 %v62, %v62
    %v486 = vmul.bf16 %v63, %v63
    %v487 = vmul.bf16 %v64, %v64
    %v488 = vmul.bf16 %v65, %v65
    %v489 = vmul.bf16 %v66, %v66
    %v490 = vmul.bf16 %v67, %v67
    %v491 = vmul.bf16 %v68, %v68
    %v492 = vmul.bf16 %v69, %v69
    %v493 = vmul.bf16 %v70, %v70
    %v494 = vmul.bf16 %v71, %v71
    %v495 = vmul.bf16 %v72, %v72
    %v496 = vmul.bf16 %v73, %v73
    %v497 = vmul.bf16 %v74, %v74
    %v498 = vmul.bf16 %v75, %v75
    %v499 = vmul.bf16 %v76, %v76
    %v500 = vmul.bf16 %v77, %v77
    %v501 = vmul.bf16 %v78, %v78
    %v502 = vmul.bf16 %v79, %v79
    %v503 = vmul.bf16 %v80, %v80
    %v552 = vunpack.c.l.b16 %v456
    %v553 = vunpack.c.h.b16 %v456
    %v554 = vunpack.c.l.b16 %v457
    %v555 = vunpack.c.h.b16 %v457
    %v556 = vunpack.c.l.b16 %v458
    %v557 = vunpack.c.h.b16 %v458
    %v558 = vunpack.c.l.b16 %v459
    %v559 = vunpack.c.h.b16 %v459
    %v560 = vunpack.c.l.b16 %v460
    %v561 = vunpack.c.h.b16 %v460
    %v562 = vunpack.c.l.b16 %v461
    %v563 = vunpack.c.h.b16 %v461
    %v564 = vunpack.c.l.b16 %v462
    %v565 = vunpack.c.h.b16 %v462
    %v566 = vunpack.c.l.b16 %v463
    %v567 = vunpack.c.h.b16 %v463
    %v568 = vunpack.c.l.b16 %v464
    %v569 = vunpack.c.h.b16 %v464
    %v570 = vunpack.c.l.b16 %v465
    %v571 = vunpack.c.h.b16 %v465
    %v572 = vunpack.c.l.b16 %v466
    %v573 = vunpack.c.h.b16 %v466
    %v574 = vunpack.c.l.b16 %v467
    %v575 = vunpack.c.h.b16 %v467
    %v576 = vunpack.c.l.b16 %v468
    %v577 = vunpack.c.h.b16 %v468
    %v578 = vunpack.c.l.b16 %v469
    %v579 = vunpack.c.h.b16 %v469
    %v580 = vunpack.c.l.b16 %v470
    %v581 = vunpack.c.h.b16 %v470
    %v582 = vunpack.c.l.b16 %v471
    %v583 = vunpack.c.h.b16 %v471
    %v584 = vunpack.c.l.b16 %v472
    %v585 = vunpack.c.h.b16 %v472
    %v586 = vunpack.c.l.b16 %v473
    %v587 = vunpack.c.h.b16 %v473
    %v588 = vunpack.c.l.b16 %v474
    %v589 = vunpack.c.h.b16 %v474
    %v590 = vunpack.c.l.b16 %v475
    %v591 = vunpack.c.h.b16 %v475
    %v592 = vunpack.c.l.b16 %v476
    %v593 = vunpack.c.h.b16 %v476
    %v594 = vunpack.c.l.b16 %v477
    %v595 = vunpack.c.h.b16 %v477
    %v596 = vunpack.c.l.b16 %v478
    %v597 = vunpack.c.h.b16 %v478
    %v598 = vunpack.c.l.b16 %v479
    %v599 = vunpack.c.h.b16 %v479
    %v600 = vunpack.c.l.b16 %v480
    %v601 = vunpack.c.h.b16 %v480
    %v602 = vunpack.c.l.b16 %v481
    %v603 = vunpack.c.h.b16 %v481
    %v604 = vunpack.c.l.b16 %v482
    %v605 = vunpack.c.h.b16 %v482
    %v606 = vunpack.c.l.b16 %v483
    %v607 = vunpack.c.h.b16 %v483
    %v608 = vunpack.c.l.b16 %v484
    %v609 = vunpack.c.h.b16 %v484
    %v610 = vunpack.c.l.b16 %v485
    %v611 = vunpack.c.h.b16 %v485
    %v612 = vunpack.c.l.b16 %v486
    %v613 = vunpack.c.h.b16 %v486
    %v614 = vunpack.c.l.b16 %v487
    %v615 = vunpack.c.h.b16 %v487
    %v616 = vunpack.c.l.b16 %v488
    %v617 = vunpack.c.h.b16 %v488
    %v618 = vunpack.c.l.b16 %v489
    %v619 = vunpack.c.h.b16 %v489
    %v620 = vunpack.c.l.b16 %v490
    %v621 = vunpack.c.h.b16 %v490
    %v622 = vunpack.c.l.b16 %v491
    %v623 = vunpack.c.h.b16 %v491
    %v624 = vunpack.c.l.b16 %v492
    %v625 = vunpack.c.h.b16 %v492
    %v626 = vunpack.c.l.b16 %v493
    %v627 = vunpack.c.h.b16 %v493
    %v628 = vunpack.c.l.b16 %v494
    %v629 = vunpack.c.h.b16 %v494
    %v630 = vunpack.c.l.b16 %v495
    %v631 = vunpack.c.h.b16 %v495
    %v632 = vunpack.c.l.b16 %v496
    %v633 = vunpack.c.h.b16 %v496
    %v634 = vunpack.c.l.b16 %v497
    %v635 = vunpack.c.h.b16 %v497
    %v636 = vunpack.c.l.b16 %v498
    %v637 = vunpack.c.h.b16 %v498
    %v638 = vunpack.c.l.b16 %v499
    %v639 = vunpack.c.h.b16 %v499
    %v640 = vunpack.c.l.b16 %v500
    %v641 = vunpack.c.h.b16 %v500
    %v642 = vunpack.c.l.b16 %v501
    %v643 = vunpack.c.h.b16 %v501
    %v644 = vunpack.c.l.b16 %v502
    %v645 = vunpack.c.h.b16 %v502
    %v646 = vunpack.c.l.b16 %v503
    %v647 = vunpack.c.h.b16 %v503
    %v648 = vpack.c.b16 %v558, %v552
    %v649 = vpack.c.b16 %v559, %v553
    %v650 = vpack.c.b16 %v560, %v554
    %v651 = vpack.c.b16 %v561, %v555
    %v652 = vpack.c.b16 %v562, %v556
    %v653 = vpack.c.b16 %v563, %v557
    %v654 = vpack.c.b16 %v570, %v564
    %v655 = vpack.c.b16 %v571, %v565
    %v656 = vpack.c.b16 %v572, %v566
    %v657 = vpack.c.b16 %v573, %v567
    %v658 = vpack.c.b16 %v574, %v568
    %v659 = vpack.c.b16 %v575, %v569
    %v660 = vpack.c.b16 %v582, %v576
    %v661 = vpack.c.b16 %v583, %v577
    %v662 = vpack.c.b16 %v584, %v578
    %v663 = vpack.c.b16 %v585, %v579
    %v664 = vpack.c.b16 %v586, %v580
    %v665 = vpack.c.b16 %v587, %v581
    %v666 = vpack.c.b16 %v594, %v588
    %v667 = vpack.c.b16 %v595, %v589
    %v668 = vpack.c.b16 %v596, %v590
    %v669 = vpack.c.b16 %v597, %v591
    %v670 = vpack.c.b16 %v598, %v592
    %v671 = vpack.c.b16 %v599, %v593
    %v672 = vpack.c.b16 %v606, %v600
    %v673 = vpack.c.b16 %v607, %v601
    %v674 = vpack.c.b16 %v608, %v602
    %v675 = vpack.c.b16 %v609, %v603
    %v676 = vpack.c.b16 %v610, %v604
    %v677 = vpack.c.b16 %v611, %v605
    %v678 = vpack.c.b16 %v618, %v612
    %v679 = vpack.c.b16 %v619, %v613
    %v680 = vpack.c.b16 %v620, %v614
    %v681 = vpack.c.b16 %v621, %v615
    %v682 = vpack.c.b16 %v622, %v616
    %v683 = vpack.c.b16 %v623, %v617
    %v684 = vpack.c.b16 %v630, %v624
    %v685 = vpack.c.b16 %v631, %v625
    %v686 = vpack.c.b16 %v632, %v626
    %v687 = vpack.c.b16 %v633, %v627
    %v688 = vpack.c.b16 %v634, %v628
    %v689 = vpack.c.b16 %v635, %v629
    %v690 = vpack.c.b16 %v642, %v636
    %v691 = vpack.c.b16 %v643, %v637
    %v692 = vpack.c.b16 %v644, %v638
    %v693 = vpack.c.b16 %v645, %v639
    %v694 = vpack.c.b16 %v646, %v640
    %v695 = vpack.c.b16 %v647, %v641
    %744 = vmatprep.subr.bf16.mxu0 %v649
    %745 = vmatpush1.bf16.msra.mxu0 %v648
    %746 = vmatprep.subr.bf16.mxu0 %v655
    %747 = vmatpush1.bf16.msra.mxu0 %v654
    %748 = vmatprep.subr.bf16.mxu0 %v661
    %749 = vmatpush1.bf16.msra.mxu0 %v660
    %750 = vmatprep.subr.bf16.mxu0 %v667
    %751 = vmatpush1.bf16.msra.mxu0 %v666
    %752 = vmatprep.subr.bf16.mxu0 %v673
    %753 = vmatpush1.bf16.msra.mxu0 %v672
    %754 = vmatprep.subr.bf16.mxu0 %v679
    %755 = vmatpush1.bf16.msra.mxu0 %v678
    %756 = vmatprep.subr.bf16.mxu0 %v685
    %757 = vmatpush1.bf16.msra.mxu0 %v684
    %758 = vmatprep.subr.bf16.mxu0 %v691
    %759 = vmatpush1.bf16.msra.mxu0 %v690
    %760 = vmatprep.subr.bf16.mxu0 0
    %761 = vmatpush1.bf16.msra.mxu0 0
    %762 = vmatprep.subr.bf16.mxu0 0
    %763 = vmatpush1.bf16.msra.mxu0 0
    %764 = vmatprep.subr.bf16.mxu0 0
    %765 = vmatpush1.bf16.msra.mxu0 0
    %766 = vmatprep.subr.bf16.mxu0 0
    %767 = vmatpush1.bf16.msra.mxu0 0
    %768 = vmatprep.subr.bf16.mxu0 0
    %769 = vmatpush1.bf16.msra.mxu0 0
    %770 = vmatprep.subr.bf16.mxu0 0
    %771 = vmatpush1.bf16.msra.mxu0 0
    %772 = vmatprep.subr.bf16.mxu0 0
    %773 = vmatpush1.bf16.msra.mxu0 0
    %774 = vmatprep.subr.bf16.mxu0 0
    %775 = vmatpush1.bf16.msra.mxu0 0
    %776 = vmatprep.mubr.bf16.mxu0 0
    %777 = vmatmul.mubr.bf16.gmra.mrb[0].mxu0 1065369472
    %v778 = vpop.f32.mrb[0].mxu0
    %v779 = vadd.f32 0.0, %v778
    %v780 = vpop.f32.mrb[0].mxu0
    %v781 = vadd.f32 0.0, %v780
    %v782 = vpop.f32.mrb[0].mxu0
    %v783 = vpop.f32.mrb[0].mxu0
    %784 = vdwg.mxu0
    %785 = vmatprep.subr.bf16.mxu0 %v651
    %786 = vmatpush1.bf16.msra.mxu0 %v650
    %787 = vmatprep.subr.bf16.mxu0 %v657
    %788 = vmatpush1.bf16.msra.mxu0 %v656
    %789 = vmatprep.subr.bf16.mxu0 %v663
    %790 = vmatpush1.bf16.msra.mxu0 %v662
    %791 = vmatprep.subr.bf16.mxu0 %v669
    %792 = vmatpush1.bf16.msra.mxu0 %v668
    %793 = vmatprep.subr.bf16.mxu0 %v675
    %794 = vmatpush1.bf16.msra.mxu0 %v674
    %795 = vmatprep.subr.bf16.mxu0 %v681
    %796 = vmatpush1.bf16.msra.mxu0 %v680
    %797 = vmatprep.subr.bf16.mxu0 %v687
    %798 = vmatpush1.bf16.msra.mxu0 %v686
    %799 = vmatprep.subr.bf16.mxu0 %v693
    %800 = vmatpush1.bf16.msra.mxu0 %v692
    %801 = vmatprep.subr.bf16.mxu0 0
    %802 = vmatpush1.bf16.msra.mxu0 0
    %803 = vmatprep.subr.bf16.mxu0 0
    %804 = vmatpush1.bf16.msra.mxu0 0
    %805 = vmatprep.subr.bf16.mxu0 0
    %806 = vmatpush1.bf16.msra.mxu0 0
    %807 = vmatprep.subr.bf16.mxu0 0
    %808 = vmatpush1.bf16.msra.mxu0 0
    %809 = vmatprep.subr.bf16.mxu0 0
    %810 = vmatpush1.bf16.msra.mxu0 0
    %811 = vmatprep.subr.bf16.mxu0 0
    %812 = vmatpush1.bf16.msra.mxu0 0
    %813 = vmatprep.subr.bf16.mxu0 0
    %814 = vmatpush1.bf16.msra.mxu0 0
    %815 = vmatprep.subr.bf16.mxu0 0
    %816 = vmatpush1.bf16.msra.mxu0 0
    %817 = vmatprep.mubr.bf16.mxu0 0
    %818 = vmatmul.mubr.bf16.gmra.mrb[0].mxu0 1065369472
    %v819 = vpop.f32.mrb[0].mxu0
    %v820 = vadd.f32 0.0, %v819
    %v821 = vpop.f32.mrb[0].mxu0
    %v822 = vadd.f32 0.0, %v821
    %v823 = vpop.f32.mrb[0].mxu0
    %v824 = vpop.f32.mrb[0].mxu0
    %825 = vdwg.mxu0
    %826 = vmatprep.subr.bf16.mxu0 %v653
    %827 = vmatpush1.bf16.msra.mxu0 %v652
    %828 = vmatprep.subr.bf16.mxu0 %v659
    %829 = vmatpush1.bf16.msra.mxu0 %v658
    %830 = vmatprep.subr.bf16.mxu0 %v665
    %831 = vmatpush1.bf16.msra.mxu0 %v664
    %832 = vmatprep.subr.bf16.mxu0 %v671
    %833 = vmatpush1.bf16.msra.mxu0 %v670
    %834 = vmatprep.subr.bf16.mxu0 %v677
    %835 = vmatpush1.bf16.msra.mxu0 %v676
    %836 = vmatprep.subr.bf16.mxu0 %v683
    %837 = vmatpush1.bf16.msra.mxu0 %v682
    %838 = vmatprep.subr.bf16.mxu0 %v689
    %839 = vmatpush1.bf16.msra.mxu0 %v688
    %840 = vmatprep.subr.bf16.mxu0 %v695
    %841 = vmatpush1.bf16.msra.mxu0 %v694
    %842 = vmatprep.subr.bf16.mxu0 0
    %843 = vmatpush1.bf16.msra.mxu0 0
    %844 = vmatprep.subr.bf16.mxu0 0
    %845 = vmatpush1.bf16.msra.mxu0 0
    %846 = vmatprep.subr.bf16.mxu0 0
    %847 = vmatpush1.bf16.msra.mxu0 0
    %848 = vmatprep.subr.bf16.mxu0 0
    %849 = vmatpush1.bf16.msra.mxu0 0
    %850 = vmatprep.subr.bf16.mxu0 0
    %851 = vmatpush1.bf16.msra.mxu0 0
    %852 = vmatprep.subr.bf16.mxu0 0
    %853 = vmatpush1.bf16.msra.mxu0 0
    %854 = vmatprep.subr.bf16.mxu0 0
    %855 = vmatpush1.bf16.msra.mxu0 0
    %856 = vmatprep.subr.bf16.mxu0 0
    %857 = vmatpush1.bf16.msra.mxu0 0
    %858 = vmatprep.mubr.bf16.mxu0 0
    %859 = vmatmul.mubr.bf16.gmra.mrb[0].mxu0 1065369472
    %v860 = vpop.f32.mrb[0].mxu0
    %v861 = vadd.f32 0.0, %v860
    %v862 = vpop.f32.mrb[0].mxu0
    %v863 = vadd.f32 0.0, %v862
    %v864 = vpop.f32.mrb[0].mxu0
    %v865 = vpop.f32.mrb[0].mxu0
    %866 = vdwg.mxu0
    %v867 = vmax.f32 %v779, 1e-24
    %v868 = vmax.f32 %v781, 1e-24
    %v869 = vmax.f32 %v820, 1e-24
    %v870 = vmax.f32 %v822, 1e-24
    %v871 = vmax.f32 %v861, 1e-24
    %v872 = vmax.f32 %v863, 1e-24
    %v873 = vrsqrt.pop %v867
    %v874 = vrsqrt.pop %v868
    %v875 = vrsqrt.pop %v869
    %v876 = vrsqrt.pop %v870
    %v877 = vrsqrt.pop %v871
    %v878 = vrsqrt.pop %v872
    %v879 = vmul.f32 %v873, 64.0
    %v880 = vmul.f32 %v874, 64.0
    %v881 = vmul.f32 %v875, 64.0
    %v882 = vmul.f32 %v876, 64.0
    %v883 = vmul.f32 %v877, 64.0
    %v884 = vmul.f32 %v878, 64.0
    %v885 = vld [vmem:[%s2] sm:$0xff]
    %v886 = vld [vmem:[%s2 + $0x8] sm:$0xff]
    %v887 = vlaneseq
    %v888 = vand.u32 %v887, 127
    %v889 = vadd.s32 %v888, 128
    %v890 = vadd.s32 %v888, 256
    %v891 = vadd.s32 %v888, 384
    %v892 = vadd.s32 %v888, 512
    %v893 = vadd.s32 %v888, 640
    %s894 = smul.u32 0, 768
    %v895 = vstv %s894
    %v896 = vadd.s32 %v888, %v895
    %v897 = vadd.s32 %v889, %v895
    %v898 = vadd.s32 %v890, %v895
    %v899 = vadd.s32 %v891, %v895
    %v900 = vadd.s32 %v892, %v895
    %v901 = vadd.s32 %v893, %v895
    %902 = vset.pattern.permute.xlu0 0
    %903 = vperm.xlu0 %902, %v885
    %v904 = vpop.permute.xlu0 %903
    %905 = vset.pattern.permute.xlu0 0
    %906 = vperm.xlu0 %905, %v886
    %v907 = vpop.permute.xlu0 %906
    %vm908 = vcmp.eq.s32.totalorder %v896, %v904
    %vm909 = vcmp.eq.s32.totalorder %v897, %v904
    %vm910 = vcmp.eq.s32.totalorder %v898, %v904
    %vm911 = vcmp.eq.s32.totalorder %v899, %v904
    %vm912 = vcmp.eq.s32.totalorder %v900, %v904
    %vm913 = vcmp.eq.s32.totalorder %v901, %v904
    %vm914 = vcmp.eq.s32.totalorder %v896, %v907
    %vm915 = vcmp.eq.s32.totalorder %v897, %v907
    %vm916 = vcmp.eq.s32.totalorder %v898, %v907
    %vm917 = vcmp.eq.s32.totalorder %v899, %v907
    %vm918 = vcmp.eq.s32.totalorder %v900, %v907
    %vm919 = vcmp.eq.s32.totalorder %v901, %v907
    %vm920 = vcmp.ne.s32.totalorder %v885, 4294967295
    %vm921 = vcmp.ne.s32.totalorder %v886, 4294967295
    %v922 = vsel %vm920, 1, 0
    %v923 = vsel %vm921, 1, 0
    %924 = vset.pattern.permute.xlu0 0
    %925 = vperm.xlu0 %924, %v922
    %v926 = vpop.permute.xlu0 %925
    %927 = vset.pattern.permute.xlu0 0
    %928 = vperm.xlu0 %927, %v923
    %v929 = vpop.permute.xlu0 %928
    %vm930 = vcmp.eq.s32.totalorder %v926, 1
    %vm931 = vcmp.eq.s32.totalorder %v929, 1
    %vm932 = vmand %vm908, %vm930
    %vm933 = vmand %vm909, %vm930
    %vm934 = vmand %vm910, %vm930
    %vm935 = vmand %vm911, %vm930
    %vm936 = vmand %vm912, %vm930
    %vm937 = vmand %vm913, %vm930
    %vm938 = vmand %vm914, %vm931
    %vm939 = vmand %vm915, %vm931
    %vm940 = vmand %vm916, %vm931
    %vm941 = vmand %vm917, %vm931
    %vm942 = vmand %vm918, %vm931
    %vm943 = vmand %vm919, %vm931
    %v944 = vlaneseq
    %v945 = vshrl.u32 %v944, 7
    %v946 = vsub.s32 0, %v945
    %v947 = vrot.slane %v879, %v946
    %v948 = vlaneseq
    %v949 = vshrl.u32 %v948, 7
    %v950 = vsub.s32 0, %v949
    %v951 = vrot.slane %v880, %v950
    %v952 = vlaneseq
    %v953 = vshrl.u32 %v952, 7
    %v954 = vsub.s32 0, %v953
    %v955 = vrot.slane %v881, %v954
    %v956 = vlaneseq
    %v957 = vshrl.u32 %v956, 7
    %v958 = vsub.s32 0, %v957
    %v959 = vrot.slane %v882, %v958
    %v960 = vlaneseq
    %v961 = vshrl.u32 %v960, 7
    %v962 = vsub.s32 0, %v961
    %v963 = vrot.slane %v883, %v962
    %v964 = vlaneseq
    %v965 = vshrl.u32 %v964, 7
    %v966 = vsub.s32 0, %v965
    %v967 = vrot.slane %v884, %v966
    %v968 = vmul.f32 %v362, %v947
    %v969 = vmul.f32 %v364, %v951
    %v970 = vmul.f32 %v405, %v955
    %v971 = vmul.f32 %v407, %v959
    %v972 = vmul.f32 %v448, %v963
    %v973 = vmul.f32 %v450, %v967
    %v974 = vmul.f32 %v366, %v947
    %v975 = vmul.f32 %v368, %v951
    %v976 = vmul.f32 %v409, %v955
    %v977 = vmul.f32 %v411, %v959
    %v978 = vmul.f32 %v452, %v963
    %v979 = vmul.f32 %v454, %v967
    %v980 = vsel %vm932, 1, 0
    %v981 = vsel %vm933, 1, 0
    %v982 = vsel %vm934, 1, 0
    %v983 = vsel %vm935, 1, 0
    %v984 = vsel %vm936, 1, 0
    %v985 = vsel %vm937, 1, 0
    %v986 = vsel %vm938, 1, 0
    %v987 = vsel %vm939, 1, 0
    %v988 = vsel %vm940, 1, 0
    %v989 = vsel %vm941, 1, 0
    %v990 = vsel %vm942, 1, 0
    %v991 = vsel %vm943, 1, 0
    %v992 = vcvt.s32.f32 %v980
    %v993 = vcvt.s32.f32 %v981
    %v994 = vcvt.s32.f32 %v982
    %v995 = vcvt.s32.f32 %v983
    %v996 = vcvt.s32.f32 %v984
    %v997 = vcvt.s32.f32 %v985
    %v998 = vcvt.s32.f32 %v986
    %v999 = vcvt.s32.f32 %v987
    %v1000 = vcvt.s32.f32 %v988
    %v1001 = vcvt.s32.f32 %v989
    %v1002 = vcvt.s32.f32 %v990
    %v1003 = vcvt.s32.f32 %v991
    %v1004 = vmul.f32 %v992, 25.6
    %v1005 = vmul.f32 %v993, 25.6
    %v1006 = vmul.f32 %v994, 25.6
    %v1007 = vmul.f32 %v995, 25.6
    %v1008 = vmul.f32 %v996, 25.6
    %v1009 = vmul.f32 %v997, 25.6
    %v1010 = vmul.f32 %v998, 25.6
    %v1011 = vmul.f32 %v999, 25.6
    %v1012 = vmul.f32 %v1000, 25.6
    %v1013 = vmul.f32 %v1001, 25.6
    %v1014 = vmul.f32 %v1002, 25.6
    %v1015 = vmul.f32 %v1003, 25.6
    %v1016 = vsub.f32 %v968, %v1004
    %v1017 = vsub.f32 %v969, %v1005
    %v1018 = vsub.f32 %v970, %v1006
    %v1019 = vsub.f32 %v971, %v1007
    %v1020 = vsub.f32 %v972, %v1008
    %v1021 = vsub.f32 %v973, %v1009
    %v1022 = vsub.f32 %v974, %v1010
    %v1023 = vsub.f32 %v975, %v1011
    %v1024 = vsub.f32 %v976, %v1012
    %v1025 = vsub.f32 %v977, %v1013
    %v1026 = vsub.f32 %v978, %v1014
    %v1027 = vsub.f32 %v979, %v1015
    %1028 = vst [vmem:[#allocation5] sm:$0xff] %v1016
    %1029 = vst [vmem:[#allocation5 + $0x8] sm:$0xff] %v1017
    %1030 = vst [vmem:[#allocation5 + $0x10] sm:$0xff] %v1018
    %1031 = vst [vmem:[#allocation5 + $0x18] sm:$0xff] %v1019
    %1032 = vst [vmem:[#allocation5 + $0x20] sm:$0xff] %v1020
    %1033 = vst [vmem:[#allocation5 + $0x28] sm:$0xff] %v1021
    %1034 = vst [vmem:[#allocation5 + $0x30] sm:$0xff] %v1022
    %1035 = vst [vmem:[#allocation5 + $0x38] sm:$0xff] %v1023
    %1036 = vst [vmem:[#allocation5 + $0x40] sm:$0xff] %v1024
    %1037 = vst [vmem:[#allocation5 + $0x48] sm:$0xff] %v1025
    %1038 = vst [vmem:[#allocation5 + $0x50] sm:$0xff] %v1026
    %1039 = vst [vmem:[#allocation5 + $0x58] sm:$0xff] %v1027
    // Predicated region
    $region18: #{tpu_custom_call.1} parent=1 // pred_check
      _
    $region19: #{tpu_custom_call.1} parent=1 // pred_check_branch
      %1041 = sbr.rel (0) target = $region21
    $region20: #{tpu_custom_call.1} parent=1 // pred_region
      %s1043 = ssub.s32 1536, 1280
      %1044 = vsyncadd [#allocation4], %s1043
      %s1045 = sshll.u32 [#allocation5], 4
      %s1046 = int_to_ptr.vmem [resolvable:$true] %s1045
      %1051 = dma.vmem_to_hbm [thread:$0]  %s1046, 1280, %s3, [#allocation4], 768, 640, 40
    $region21: #{tpu_custom_call.1} parent=1 // pred_fallthru
      _
    // Predicated region
    $region22: #{tpu_custom_call.1} parent=1 // pred_check
      _
    $region23: #{tpu_custom_call.1} parent=1 // pred_check_branch
      %1053 = sbr.rel (0) target = $region25
    $region24: #{tpu_custom_call.1} parent=1 // pred_region
      %1054 = dma.done [#allocation4], 1536
    $region25: #{tpu_custom_call.1} parent=1 // pred_fallthru
      _
    %1055 = vsyncpa [#allocation3], 1
    %1056 = vsyncpa [#allocation4], 1

</llo_original>
